<compile_context>
chip_gen: v6e
topology: v6e:2x2x1
jax: 0.10.0
libtpu: 0.0.40
codegen_flags: <defaults>
</compile_context>

<pallas_src>
import math
import functools
import numpy as np
import jax
import jax.numpy as jnp
from jax import lax
from jax.experimental import pallas as pl
from jax.experimental.pallas import tpu as pltpu


# ----------------- elastic basis construction (deterministic, numpy) -----------------
def hermite_poly(X, n):
    c = [0.0] * n + [1.0]
    if len(c) == 1:
        c0, c1 = c[0], 0.0
    elif len(c) == 2:
        c0, c1 = c[0], c[1]
    else:
        nd = len(c)
        c0, c1 = c[-2], c[-1]
        for i in range(3, len(c) + 1):
            tmp = c0
            nd = nd - 1
            c0 = c[-i] - c1 * (nd - 1)
            c1 = tmp + c1 * X
    return c0 + c1 * X


def get_basis_for_grid(X, Y, effective_size, scale=0.9):
    G = np.exp(-(X ** 2 + Y ** 2) / (2 * scale ** 2))
    basis = []
    for ny in range(effective_size):
        for nx in range(effective_size):
            basis.append(G * hermite_poly(X / scale, nx) * hermite_poly(Y / scale, ny))
    return np.stack(basis)


def grid_shift(size, angle):
    X = np.linspace(0.0, size, size)
    Y = np.linspace(0.0, size, size)
    X = np.tile(X[None, :], (size, 1))
    Y = np.tile(Y[:, None], (1, size))
    dX = X * np.cos(angle) + Y * np.sin(angle)
    dY = -X * np.sin(angle) + Y * np.cos(angle)
    dX = dX / (np.abs(dX).max() + 1e-08)
    dY = dY / (np.abs(dY).max() + 1e-08)
    return dX, dY


def get_circular_displacements(size, n, alpha=1):
    X = np.linspace(-(size // 2), size // 2, size)
    Y = np.linspace(-(size // 2), size // 2, size)
    X = np.tile(X[None, :], (size, 1))
    Y = np.tile(Y[:, None], (1, size))
    grids = [(X, Y)]
    for angle in range(n):
        angle = 2 * np.pi * angle / n
        dX, dY = grid_shift(size, angle)
        grids.append((X + alpha * dX, Y + alpha * dY))
    return grids


def elastic_basis(size, effective_size, n, alpha=1, scale=0.9):
    basis = []
    for X, Y in get_circular_displacements(size, n, alpha):
        basis.append(get_basis_for_grid(X, Y, effective_size, scale=scale))
    return np.stack(basis, 1)  # (F, n+1, size, size)


def make_elastic_basis(size, effective_size, num_displacements, scale=0.9, alpha=1):
    basis = elastic_basis(size, effective_size, num_displacements, alpha=alpha, scale=scale)
    norm = np.sqrt((basis ** 2).sum(-1).sum(-1))[:, 0][:, None, None, None]
    return (basis / norm).astype(np.float32)  # (F, S, K, K)


# ----------------- Pallas kernel: fused im2col stack + single MXU matmul -----------------
def _round_up(x, m):
    return ((x + m - 1) // m) * m


def _dist_conv_kernel(w_ref, x_ref, o_ref, xcol_ref, *, K, Wp, Cin_pad, L_out, B):
    # w_ref   : (1, O, KK*Cin_pad)      bf16  -- per-group weights, rows = (ky, kx, cin)
    # x_ref   : (1, B, Cin_pad, L_in)   bf16  -- row-major flattened padded images
    # o_ref   : (B, O, L_out)           f32   -- lane-dense output slab for this s
    # xcol_ref: (KK*Cin_pad, B*L_out)   bf16  -- VMEM scratch: stacked im2col operand
    #
    # Build the stacked operand ONCE per (s): every (ky, kx) tap is a static
    # lane-shifted slice of the flat image, copied into an 8-sublane-aligned row
    # block and a 128-lane-aligned column block.  The whole K*K*Cin contraction
    # then runs as a single MXU matmul instead of K*K tiny Cin-deep ones.
    for ky in range(K):
        for kx in range(K):
            t = ky * K + kx
            d = ky * Wp + kx
            for b in range(B):
                xcol_ref[t * Cin_pad:(t + 1) * Cin_pad,
                         b * L_out:(b + 1) * L_out] = x_ref[0, b, :, d:d + L_out]
    acc = jnp.dot(w_ref[0], xcol_ref[...],
                  preferred_element_type=jnp.float32)          # (O, B*L_out) f32
    for b in range(B):
        o_ref[b] = acc[:, b * L_out:(b + 1) * L_out]           # lane-aligned slices


def dist_conv_h_h(x, weight, basis, *, stride=1, padding=0, bias=None):
    """Forward pass of DistConv_H_H (bias defaults to None, as in the module)."""
    B, Cin, S, H, W = x.shape
    O, _, F_ = weight.shape
    K = basis.shape[-1]
    KK = K * K
    Cin_pad = _round_up(max(Cin, 8), 8)   # sublane-aligned tap chunks in the stacked operand

    # --- expand weight onto the elastic basis; contraction rows ordered (ky, kx, cin_pad)
    # so each filter tap is a contiguous, sublane-aligned row block of the stacked operand.
    kern = weight.reshape(O * Cin, F_) @ basis.reshape(F_, S * KK)            # f32, tiny
    kern = kern.reshape(O, Cin, S, K, K)
    w_prep = jnp.transpose(kern, (2, 0, 3, 4, 1))                             # (S, O, K, K, Cin)
    w_prep = jnp.pad(w_prep, ((0, 0),) * 4 + ((0, Cin_pad - Cin),))
    w_prep = w_prep.reshape(S, O, KK * Cin_pad).astype(jnp.bfloat16)

    # --- input glue: cast to bf16 FIRST (halves the bytes the layout pass moves), then
    # one transpose + (optional) spatial pad + flatten + one combined zero-pad.  Every
    # filter tap becomes a static lane shift of the row-major flat image, so the 25x
    # im2col expansion never materializes in HBM.
    xb = x.astype(jnp.bfloat16)
    xk = jnp.transpose(xb, (2, 0, 1, 3, 4))                                   # (S, B, Cin, H, W)
    if padding:
        xk = jnp.pad(xk, ((0, 0), (0, 0), (0, 0),
                          (padding, padding), (padding, padding)))
    Hp, Wp = xk.shape[-2], xk.shape[-1]
    HW = Hp * Wp
    halo = (K - 1) * Wp + (K - 1)
    L_out = _round_up(HW, 128)             # lane-dense output width
    L_in = _round_up(L_out + halo, 128)    # + halo so every tap slice stays in-bounds
    x_flat = xk.reshape(S, B, Cin, HW)
    x_flat = jnp.pad(x_flat, ((0, 0), (0, 0), (0, Cin_pad - Cin), (0, L_in - HW)))

    # TODO(synk): for large images / Cin, add an L_out-tiling grid axis with a
    # (K-1)*Wp+(K-1) halo on the x slice and set vmem_limit_bytes (v7x: 64 MiB physical,
    # 32 MiB default scoped); also hoist the K distinct kx lane shifts via pltpu.roll
    # instead of K*K lane-misaligned slices once Cin*L grows.

    flops = 2 * S * O * (KK * Cin_pad) * (B * L_out)
    bytes_accessed = (int(w_prep.size) * 2 + int(x_flat.size) * 2
                      + B * O * S * L_out * 4)

    kernel = functools.partial(_dist_conv_kernel, K=K, Wp=Wp,
                               Cin_pad=Cin_pad, L_out=L_out, B=B)

    out_k = pl.pallas_call(
        kernel,
        out_shape=jax.ShapeDtypeStruct((B, O, S * L_out), jnp.float32),
        grid_spec=pltpu.PrefetchScalarGridSpec(
            num_scalar_prefetch=0,
            grid=(S,),                      # >= 2 parallel steps so v7x megacore can shard
            in_specs=[
                pl.BlockSpec((1, O, KK * Cin_pad), lambda s: (s, 0, 0)),
                pl.BlockSpec((1, B, Cin_pad, L_in), lambda s: (s, 0, 0, 0)),
            ],
            # kernel writes directly in the module's (B, O, S, .) order: no post-kernel
            # transpose pass over the largest (f32) tensor.
            out_specs=pl.BlockSpec((B, O, L_out), lambda s: (0, 0, s)),
            scratch_shapes=[pltpu.VMEM((KK * Cin_pad, B * L_out), jnp.bfloat16)],
        ),
        compiler_params=pltpu.CompilerParams(dimension_semantics=("parallel",)),
        cost_estimate=pl.CostEstimate(flops=flops, transcendentals=0,
                                      bytes_accessed=bytes_accessed),
    )(w_prep, x_flat)

    # --- unflatten, crop to valid conv positions, subsample for stride (output is
    # already in (B, O, S, .) order so this is a single slice/reshape copy).
    # TODO(synk): for stride > 1, apply the stride selection in the kernel epilogue
    # instead of computing the full stride-1 output and subsampling here.
    Ho1, Wo1 = Hp - K + 1, Wp - K + 1
    out = out_k.reshape(B, O, S, L_out)[..., :HW].reshape(B, O, S, Hp, Wp)
    out = out[..., :Ho1:stride, :Wo1:stride]                                  # (B, O, S, Ho, Wo)
    if bias is not None:
        out = out + bias.reshape(1, -1, 1, 1, 1)
    return out


# ----------------- demo / self-check -----------------
if __name__ == "__main__":
    in_channels, out_channels = 4, 4
    kernel_size, effective_size = 5, 2
    num_displacements = 8
    S = num_displacements + 1
    num_funcs = effective_size ** 2
    B, H, W = 2, 16, 16
    stride, padding = 1, 0

    basis = jnp.asarray(make_elastic_basis(kernel_size, effective_size, num_displacements))

    key = jax.random.PRNGKey(0)
    kx_, kw_ = jax.random.split(key)
    # kaiming_uniform_(a=sqrt(5)) on (O, Cin, F): bound = 1/sqrt(fan_in), fan_in = Cin*F
    fan_in = in_channels * num_funcs
    bound = 1.0 / math.sqrt(fan_in)
    weight = jax.random.uniform(kw_, (out_channels, in_channels, num_funcs),
                                jnp.float32, -bound, bound)
    x = jax.random.normal(kx_, (B, in_channels, S, H, W), jnp.float32)

    out = jax.block_until_ready(
        dist_conv_h_h(x, weight, basis, stride=stride, padding=padding))

    # reference: grouped conv via lax.conv_general_dilated (same math as F.conv2d groups=S)
    K = kernel_size
    kern = weight.reshape(out_channels * in_channels, num_funcs) @ basis.reshape(num_funcs, S * K * K)
    kern = kern.reshape(out_channels, in_channels, S, K, K).transpose(2, 0, 1, 3, 4)
    kern = kern.reshape(S * out_channels, in_channels, K, K)
    x_flat = jnp.transpose(x, (0, 2, 1, 3, 4)).reshape(B, S * in_channels, H, W)
    ref = lax.conv_general_dilated(
        x_flat, kern, (stride, stride), [(padding, padding), (padding, padding)],
        dimension_numbers=("NCHW", "OIHW", "NCHW"), feature_group_count=S)
    Ho, Wo = ref.shape[-2:]
    ref = ref.reshape(B, S, out_channels, Ho, Wo).transpose(0, 2, 1, 3, 4)

    assert out.shape == ref.shape == (B, out_channels, S, Ho, Wo)
    np.testing.assert_allclose(np.asarray(out), np.asarray(ref), rtol=2e-2, atol=2e-2)
    print("KERNEL_OK")
</pallas_src>

<mosaic_0001>
module attributes {stable_mosaic.version = 11 : i64} {
  func.func @_dist_conv_kernel(%arg0: i32, %arg1: memref<1x4x200xbf16, #tpu.memory_space<vmem>>, %arg2: memref<1x2x8x384xbf16, #tpu.memory_space<vmem>>, %arg3: memref<2x4x256xf32, #tpu.memory_space<vmem>>, %arg4: memref<200x512xbf16, #tpu.memory_space<vmem>>) attributes {dimension_semantics = [#tpu.dimension_semantics<parallel>], iteration_bounds = array<i64: 9>, scalar_prefetch = 0 : i64, scratch_operands = 1 : i64, tpu.core_type = #tpu.core_type<tc>, window_params = [{transform_indices = @transform_0, window_bounds = array<i64: 1, 4, 200>}, {transform_indices = @transform_1, window_bounds = array<i64: 1, 2, 8, 384>}, {transform_indices = @transform_2, window_bounds = array<i64: 2, 4, 256>}]} {
    %c0 = arith.constant 0 : index
    %c0_0 = arith.constant 0 : index
    %c0_1 = arith.constant 0 : index
    %c0_2 = arith.constant 0 : index
    %0 = vector.load %arg2[%c0, %c0_0, %c0_1, %c0_2] : memref<1x2x8x384xbf16, #tpu.memory_space<vmem>>, vector<1x1x8x256xbf16>
    %1 = vector.shape_cast %0 : vector<1x1x8x256xbf16> to vector<8x256xbf16>
    %c0_3 = arith.constant 0 : index
    %c0_4 = arith.constant 0 : index
    %2 = vector.load %arg4[%c0_3, %c0_4] : memref<200x512xbf16, #tpu.memory_space<vmem>>, vector<8x256xbf16>
    tpu.vector_store %arg4[%c0_3, %c0_4], %1 {strides = array<i32>} : memref<200x512xbf16, #tpu.memory_space<vmem>>, vector<8x256xbf16>,
    %c0_5 = arith.constant 0 : index
    %c1 = arith.constant 1 : index
    %c0_6 = arith.constant 0 : index
    %c0_7 = arith.constant 0 : index
    %3 = vector.load %arg2[%c0_5, %c1, %c0_6, %c0_7] : memref<1x2x8x384xbf16, #tpu.memory_space<vmem>>, vector<1x1x8x256xbf16>
    %4 = vector.shape_cast %3 : vector<1x1x8x256xbf16> to vector<8x256xbf16>
    %c0_8 = arith.constant 0 : index
    %c256 = arith.constant 256 : index
    %5 = vector.load %arg4[%c0_8, %c256] : memref<200x512xbf16, #tpu.memory_space<vmem>>, vector<8x256xbf16>
    tpu.vector_store %arg4[%c0_8, %c256], %4 {strides = array<i32>} : memref<200x512xbf16, #tpu.memory_space<vmem>>, vector<8x256xbf16>,
    %c0_9 = arith.constant 0 : index
    %c0_10 = arith.constant 0 : index
    %c0_11 = arith.constant 0 : index
    %c1_12 = arith.constant 1 : index
    %6 = vector.load %arg2[%c0_9, %c0_10, %c0_11, %c1_12] : memref<1x2x8x384xbf16, #tpu.memory_space<vmem>>, vector<1x1x8x256xbf16>
    %7 = vector.shape_cast %6 : vector<1x1x8x256xbf16> to vector<8x256xbf16>
    %c8 = arith.constant 8 : index
    %c0_13 = arith.constant 0 : index
    %8 = vector.load %arg4[%c8, %c0_13] : memref<200x512xbf16, #tpu.memory_space<vmem>>, vector<8x256xbf16>
    tpu.vector_store %arg4[%c8, %c0_13], %7 {strides = array<i32>} : memref<200x512xbf16, #tpu.memory_space<vmem>>, vector<8x256xbf16>,
    %c0_14 = arith.constant 0 : index
    %c1_15 = arith.constant 1 : index
    %c0_16 = arith.constant 0 : index
    %c1_17 = arith.constant 1 : index
    %9 = vector.load %arg2[%c0_14, %c1_15, %c0_16, %c1_17] : memref<1x2x8x384xbf16, #tpu.memory_space<vmem>>, vector<1x1x8x256xbf16>
    %10 = vector.shape_cast %9 : vector<1x1x8x256xbf16> to vector<8x256xbf16>
    %c8_18 = arith.constant 8 : index
    %c256_19 = arith.constant 256 : index
    %11 = vector.load %arg4[%c8_18, %c256_19] : memref<200x512xbf16, #tpu.memory_space<vmem>>, vector<8x256xbf16>
    tpu.vector_store %arg4[%c8_18, %c256_19], %10 {strides = array<i32>} : memref<200x512xbf16, #tpu.memory_space<vmem>>, vector<8x256xbf16>,
    %c0_20 = arith.constant 0 : index
    %c0_21 = arith.constant 0 : index
    %c0_22 = arith.constant 0 : index
    %c2 = arith.constant 2 : index
    %12 = vector.load %arg2[%c0_20, %c0_21, %c0_22, %c2] : memref<1x2x8x384xbf16, #tpu.memory_space<vmem>>, vector<1x1x8x256xbf16>
    %13 = vector.shape_cast %12 : vector<1x1x8x256xbf16> to vector<8x256xbf16>
    %c16 = arith.constant 16 : index
    %c0_23 = arith.constant 0 : index
    %14 = vector.load %arg4[%c16, %c0_23] : memref<200x512xbf16, #tpu.memory_space<vmem>>, vector<8x256xbf16>
    tpu.vector_store %arg4[%c16, %c0_23], %13 {strides = array<i32>} : memref<200x512xbf16, #tpu.memory_space<vmem>>, vector<8x256xbf16>,
    %c0_24 = arith.constant 0 : index
    %c1_25 = arith.constant 1 : index
    %c0_26 = arith.constant 0 : index
    %c2_27 = arith.constant 2 : index
    %15 = vector.load %arg2[%c0_24, %c1_25, %c0_26, %c2_27] : memref<1x2x8x384xbf16, #tpu.memory_space<vmem>>, vector<1x1x8x256xbf16>
    %16 = vector.shape_cast %15 : vector<1x1x8x256xbf16> to vector<8x256xbf16>
    %c16_28 = arith.constant 16 : index
    %c256_29 = arith.constant 256 : index
    %17 = vector.load %arg4[%c16_28, %c256_29] : memref<200x512xbf16, #tpu.memory_space<vmem>>, vector<8x256xbf16>
    tpu.vector_store %arg4[%c16_28, %c256_29], %16 {strides = array<i32>} : memref<200x512xbf16, #tpu.memory_space<vmem>>, vector<8x256xbf16>,
    %c0_30 = arith.constant 0 : index
    %c0_31 = arith.constant 0 : index
    %c0_32 = arith.constant 0 : index
    %c3 = arith.constant 3 : index
    %18 = vector.load %arg2[%c0_30, %c0_31, %c0_32, %c3] : memref<1x2x8x384xbf16, #tpu.memory_space<vmem>>, vector<1x1x8x256xbf16>
    %19 = vector.shape_cast %18 : vector<1x1x8x256xbf16> to vector<8x256xbf16>
    %c24 = arith.constant 24 : index
    %c0_33 = arith.constant 0 : index
    %20 = vector.load %arg4[%c24, %c0_33] : memref<200x512xbf16, #tpu.memory_space<vmem>>, vector<8x256xbf16>
    tpu.vector_store %arg4[%c24, %c0_33], %19 {strides = array<i32>} : memref<200x512xbf16, #tpu.memory_space<vmem>>, vector<8x256xbf16>,
    %c0_34 = arith.constant 0 : index
    %c1_35 = arith.constant 1 : index
    %c0_36 = arith.constant 0 : index
    %c3_37 = arith.constant 3 : index
    %21 = vector.load %arg2[%c0_34, %c1_35, %c0_36, %c3_37] : memref<1x2x8x384xbf16, #tpu.memory_space<vmem>>, vector<1x1x8x256xbf16>
    %22 = vector.shape_cast %21 : vector<1x1x8x256xbf16> to vector<8x256xbf16>
    %c24_38 = arith.constant 24 : index
    %c256_39 = arith.constant 256 : index
    %23 = vector.load %arg4[%c24_38, %c256_39] : memref<200x512xbf16, #tpu.memory_space<vmem>>, vector<8x256xbf16>
    tpu.vector_store %arg4[%c24_38, %c256_39], %22 {strides = array<i32>} : memref<200x512xbf16, #tpu.memory_space<vmem>>, vector<8x256xbf16>,
    %c0_40 = arith.constant 0 : index
    %c0_41 = arith.constant 0 : index
    %c0_42 = arith.constant 0 : index
    %c4 = arith.constant 4 : index
    %24 = vector.load %arg2[%c0_40, %c0_41, %c0_42, %c4] : memref<1x2x8x384xbf16, #tpu.memory_space<vmem>>, vector<1x1x8x256xbf16>
    %25 = vector.shape_cast %24 : vector<1x1x8x256xbf16> to vector<8x256xbf16>
    %c32 = arith.constant 32 : index
    %c0_43 = arith.constant 0 : index
    %26 = vector.load %arg4[%c32, %c0_43] : memref<200x512xbf16, #tpu.memory_space<vmem>>, vector<8x256xbf16>
    tpu.vector_store %arg4[%c32, %c0_43], %25 {strides = array<i32>} : memref<200x512xbf16, #tpu.memory_space<vmem>>, vector<8x256xbf16>,
    %c0_44 = arith.constant 0 : index
    %c1_45 = arith.constant 1 : index
    %c0_46 = arith.constant 0 : index
    %c4_47 = arith.constant 4 : index
    %27 = vector.load %arg2[%c0_44, %c1_45, %c0_46, %c4_47] : memref<1x2x8x384xbf16, #tpu.memory_space<vmem>>, vector<1x1x8x256xbf16>
    %28 = vector.shape_cast %27 : vector<1x1x8x256xbf16> to vector<8x256xbf16>
    %c32_48 = arith.constant 32 : index
    %c256_49 = arith.constant 256 : index
    %29 = vector.load %arg4[%c32_48, %c256_49] : memref<200x512xbf16, #tpu.memory_space<vmem>>, vector<8x256xbf16>
    tpu.vector_store %arg4[%c32_48, %c256_49], %28 {strides = array<i32>} : memref<200x512xbf16, #tpu.memory_space<vmem>>, vector<8x256xbf16>,
    %c0_50 = arith.constant 0 : index
    %c0_51 = arith.constant 0 : index
    %c0_52 = arith.constant 0 : index
    %c16_53 = arith.constant 16 : index
    %30 = vector.load %arg2[%c0_50, %c0_51, %c0_52, %c16_53] : memref<1x2x8x384xbf16, #tpu.memory_space<vmem>>, vector<1x1x8x256xbf16>
    %31 = vector.shape_cast %30 : vector<1x1x8x256xbf16> to vector<8x256xbf16>
    %c40 = arith.constant 40 : index
    %c0_54 = arith.constant 0 : index
    %32 = vector.load %arg4[%c40, %c0_54] : memref<200x512xbf16, #tpu.memory_space<vmem>>, vector<8x256xbf16>
    tpu.vector_store %arg4[%c40, %c0_54], %31 {strides = array<i32>} : memref<200x512xbf16, #tpu.memory_space<vmem>>, vector<8x256xbf16>,
    %c0_55 = arith.constant 0 : index
    %c1_56 = arith.constant 1 : index
    %c0_57 = arith.constant 0 : index
    %c16_58 = arith.constant 16 : index
    %33 = vector.load %arg2[%c0_55, %c1_56, %c0_57, %c16_58] : memref<1x2x8x384xbf16, #tpu.memory_space<vmem>>, vector<1x1x8x256xbf16>
    %34 = vector.shape_cast %33 : vector<1x1x8x256xbf16> to vector<8x256xbf16>
    %c40_59 = arith.constant 40 : index
    %c256_60 = arith.constant 256 : index
    %35 = vector.load %arg4[%c40_59, %c256_60] : memref<200x512xbf16, #tpu.memory_space<vmem>>, vector<8x256xbf16>
    tpu.vector_store %arg4[%c40_59, %c256_60], %34 {strides = array<i32>} : memref<200x512xbf16, #tpu.memory_space<vmem>>, vector<8x256xbf16>,
    %c0_61 = arith.constant 0 : index
    %c0_62 = arith.constant 0 : index
    %c0_63 = arith.constant 0 : index
    %c17 = arith.constant 17 : index
    %36 = vector.load %arg2[%c0_61, %c0_62, %c0_63, %c17] : memref<1x2x8x384xbf16, #tpu.memory_space<vmem>>, vector<1x1x8x256xbf16>
    %37 = vector.shape_cast %36 : vector<1x1x8x256xbf16> to vector<8x256xbf16>
    %c48 = arith.constant 48 : index
    %c0_64 = arith.constant 0 : index
    %38 = vector.load %arg4[%c48, %c0_64] : memref<200x512xbf16, #tpu.memory_space<vmem>>, vector<8x256xbf16>
    tpu.vector_store %arg4[%c48, %c0_64], %37 {strides = array<i32>} : memref<200x512xbf16, #tpu.memory_space<vmem>>, vector<8x256xbf16>,
    %c0_65 = arith.constant 0 : index
    %c1_66 = arith.constant 1 : index
    %c0_67 = arith.constant 0 : index
    %c17_68 = arith.constant 17 : index
    %39 = vector.load %arg2[%c0_65, %c1_66, %c0_67, %c17_68] : memref<1x2x8x384xbf16, #tpu.memory_space<vmem>>, vector<1x1x8x256xbf16>
    %40 = vector.shape_cast %39 : vector<1x1x8x256xbf16> to vector<8x256xbf16>
    %c48_69 = arith.constant 48 : index
    %c256_70 = arith.constant 256 : index
    %41 = vector.load %arg4[%c48_69, %c256_70] : memref<200x512xbf16, #tpu.memory_space<vmem>>, vector<8x256xbf16>
    tpu.vector_store %arg4[%c48_69, %c256_70], %40 {strides = array<i32>} : memref<200x512xbf16, #tpu.memory_space<vmem>>, vector<8x256xbf16>,
    %c0_71 = arith.constant 0 : index
    %c0_72 = arith.constant 0 : index
    %c0_73 = arith.constant 0 : index
    %c18 = arith.constant 18 : index
    %42 = vector.load %arg2[%c0_71, %c0_72, %c0_73, %c18] : memref<1x2x8x384xbf16, #tpu.memory_space<vmem>>, vector<1x1x8x256xbf16>
    %43 = vector.shape_cast %42 : vector<1x1x8x256xbf16> to vector<8x256xbf16>
    %c56 = arith.constant 56 : index
    %c0_74 = arith.constant 0 : index
    %44 = vector.load %arg4[%c56, %c0_74] : memref<200x512xbf16, #tpu.memory_space<vmem>>, vector<8x256xbf16>
    tpu.vector_store %arg4[%c56, %c0_74], %43 {strides = array<i32>} : memref<200x512xbf16, #tpu.memory_space<vmem>>, vector<8x256xbf16>,
    %c0_75 = arith.constant 0 : index
    %c1_76 = arith.constant 1 : index
    %c0_77 = arith.constant 0 : index
    %c18_78 = arith.constant 18 : index
    %45 = vector.load %arg2[%c0_75, %c1_76, %c0_77, %c18_78] : memref<1x2x8x384xbf16, #tpu.memory_space<vmem>>, vector<1x1x8x256xbf16>
    %46 = vector.shape_cast %45 : vector<1x1x8x256xbf16> to vector<8x256xbf16>
    %c56_79 = arith.constant 56 : index
    %c256_80 = arith.constant 256 : index
    %47 = vector.load %arg4[%c56_79, %c256_80] : memref<200x512xbf16, #tpu.memory_space<vmem>>, vector<8x256xbf16>
    tpu.vector_store %arg4[%c56_79, %c256_80], %46 {strides = array<i32>} : memref<200x512xbf16, #tpu.memory_space<vmem>>, vector<8x256xbf16>,
    %c0_81 = arith.constant 0 : index
    %c0_82 = arith.constant 0 : index
    %c0_83 = arith.constant 0 : index
    %c19 = arith.constant 19 : index
    %48 = vector.load %arg2[%c0_81, %c0_82, %c0_83, %c19] : memref<1x2x8x384xbf16, #tpu.memory_space<vmem>>, vector<1x1x8x256xbf16>
    %49 = vector.shape_cast %48 : vector<1x1x8x256xbf16> to vector<8x256xbf16>
    %c64 = arith.constant 64 : index
    %c0_84 = arith.constant 0 : index
    %50 = vector.load %arg4[%c64, %c0_84] : memref<200x512xbf16, #tpu.memory_space<vmem>>, vector<8x256xbf16>
    tpu.vector_store %arg4[%c64, %c0_84], %49 {strides = array<i32>} : memref<200x512xbf16, #tpu.memory_space<vmem>>, vector<8x256xbf16>,
    %c0_85 = arith.constant 0 : index
    %c1_86 = arith.constant 1 : index
    %c0_87 = arith.constant 0 : index
    %c19_88 = arith.constant 19 : index
    %51 = vector.load %arg2[%c0_85, %c1_86, %c0_87, %c19_88] : memref<1x2x8x384xbf16, #tpu.memory_space<vmem>>, vector<1x1x8x256xbf16>
    %52 = vector.shape_cast %51 : vector<1x1x8x256xbf16> to vector<8x256xbf16>
    %c64_89 = arith.constant 64 : index
    %c256_90 = arith.constant 256 : index
    %53 = vector.load %arg4[%c64_89, %c256_90] : memref<200x512xbf16, #tpu.memory_space<vmem>>, vector<8x256xbf16>
    tpu.vector_store %arg4[%c64_89, %c256_90], %52 {strides = array<i32>} : memref<200x512xbf16, #tpu.memory_space<vmem>>, vector<8x256xbf16>,
    %c0_91 = arith.constant 0 : index
    %c0_92 = arith.constant 0 : index
    %c0_93 = arith.constant 0 : index
    %c20 = arith.constant 20 : index
    %54 = vector.load %arg2[%c0_91, %c0_92, %c0_93, %c20] : memref<1x2x8x384xbf16, #tpu.memory_space<vmem>>, vector<1x1x8x256xbf16>
    %55 = vector.shape_cast %54 : vector<1x1x8x256xbf16> to vector<8x256xbf16>
    %c72 = arith.constant 72 : index
    %c0_94 = arith.constant 0 : index
    %56 = vector.load %arg4[%c72, %c0_94] : memref<200x512xbf16, #tpu.memory_space<vmem>>, vector<8x256xbf16>
    tpu.vector_store %arg4[%c72, %c0_94], %55 {strides = array<i32>} : memref<200x512xbf16, #tpu.memory_space<vmem>>, vector<8x256xbf16>,
    %c0_95 = arith.constant 0 : index
    %c1_96 = arith.constant 1 : index
    %c0_97 = arith.constant 0 : index
    %c20_98 = arith.constant 20 : index
    %57 = vector.load %arg2[%c0_95, %c1_96, %c0_97, %c20_98] : memref<1x2x8x384xbf16, #tpu.memory_space<vmem>>, vector<1x1x8x256xbf16>
    %58 = vector.shape_cast %57 : vector<1x1x8x256xbf16> to vector<8x256xbf16>
    %c72_99 = arith.constant 72 : index
    %c256_100 = arith.constant 256 : index
    %59 = vector.load %arg4[%c72_99, %c256_100] : memref<200x512xbf16, #tpu.memory_space<vmem>>, vector<8x256xbf16>
    tpu.vector_store %arg4[%c72_99, %c256_100], %58 {strides = array<i32>} : memref<200x512xbf16, #tpu.memory_space<vmem>>, vector<8x256xbf16>,
    %c0_101 = arith.constant 0 : index
    %c0_102 = arith.constant 0 : index
    %c0_103 = arith.constant 0 : index
    %c32_104 = arith.constant 32 : index
    %60 = vector.load %arg2[%c0_101, %c0_102, %c0_103, %c32_104] : memref<1x2x8x384xbf16, #tpu.memory_space<vmem>>, vector<1x1x8x256xbf16>
    %61 = vector.shape_cast %60 : vector<1x1x8x256xbf16> to vector<8x256xbf16>
    %c80 = arith.constant 80 : index
    %c0_105 = arith.constant 0 : index
    %62 = vector.load %arg4[%c80, %c0_105] : memref<200x512xbf16, #tpu.memory_space<vmem>>, vector<8x256xbf16>
    tpu.vector_store %arg4[%c80, %c0_105], %61 {strides = array<i32>} : memref<200x512xbf16, #tpu.memory_space<vmem>>, vector<8x256xbf16>,
    %c0_106 = arith.constant 0 : index
    %c1_107 = arith.constant 1 : index
    %c0_108 = arith.constant 0 : index
    %c32_109 = arith.constant 32 : index
    %63 = vector.load %arg2[%c0_106, %c1_107, %c0_108, %c32_109] : memref<1x2x8x384xbf16, #tpu.memory_space<vmem>>, vector<1x1x8x256xbf16>
    %64 = vector.shape_cast %63 : vector<1x1x8x256xbf16> to vector<8x256xbf16>
    %c80_110 = arith.constant 80 : index
    %c256_111 = arith.constant 256 : index
    %65 = vector.load %arg4[%c80_110, %c256_111] : memref<200x512xbf16, #tpu.memory_space<vmem>>, vector<8x256xbf16>
    tpu.vector_store %arg4[%c80_110, %c256_111], %64 {strides = array<i32>} : memref<200x512xbf16, #tpu.memory_space<vmem>>, vector<8x256xbf16>,
    %c0_112 = arith.constant 0 : index
    %c0_113 = arith.constant 0 : index
    %c0_114 = arith.constant 0 : index
    %c33 = arith.constant 33 : index
    %66 = vector.load %arg2[%c0_112, %c0_113, %c0_114, %c33] : memref<1x2x8x384xbf16, #tpu.memory_space<vmem>>, vector<1x1x8x256xbf16>
    %67 = vector.shape_cast %66 : vector<1x1x8x256xbf16> to vector<8x256xbf16>
    %c88 = arith.constant 88 : index
    %c0_115 = arith.constant 0 : index
    %68 = vector.load %arg4[%c88, %c0_115] : memref<200x512xbf16, #tpu.memory_space<vmem>>, vector<8x256xbf16>
    tpu.vector_store %arg4[%c88, %c0_115], %67 {strides = array<i32>} : memref<200x512xbf16, #tpu.memory_space<vmem>>, vector<8x256xbf16>,
    %c0_116 = arith.constant 0 : index
    %c1_117 = arith.constant 1 : index
    %c0_118 = arith.constant 0 : index
    %c33_119 = arith.constant 33 : index
    %69 = vector.load %arg2[%c0_116, %c1_117, %c0_118, %c33_119] : memref<1x2x8x384xbf16, #tpu.memory_space<vmem>>, vector<1x1x8x256xbf16>
    %70 = vector.shape_cast %69 : vector<1x1x8x256xbf16> to vector<8x256xbf16>
    %c88_120 = arith.constant 88 : index
    %c256_121 = arith.constant 256 : index
    %71 = vector.load %arg4[%c88_120, %c256_121] : memref<200x512xbf16, #tpu.memory_space<vmem>>, vector<8x256xbf16>
    tpu.vector_store %arg4[%c88_120, %c256_121], %70 {strides = array<i32>} : memref<200x512xbf16, #tpu.memory_space<vmem>>, vector<8x256xbf16>,
    %c0_122 = arith.constant 0 : index
    %c0_123 = arith.constant 0 : index
    %c0_124 = arith.constant 0 : index
    %c34 = arith.constant 34 : index
    %72 = vector.load %arg2[%c0_122, %c0_123, %c0_124, %c34] : memref<1x2x8x384xbf16, #tpu.memory_space<vmem>>, vector<1x1x8x256xbf16>
    %73 = vector.shape_cast %72 : vector<1x1x8x256xbf16> to vector<8x256xbf16>
    %c96 = arith.constant 96 : index
    %c0_125 = arith.constant 0 : index
    %74 = vector.load %arg4[%c96, %c0_125] : memref<200x512xbf16, #tpu.memory_space<vmem>>, vector<8x256xbf16>
    tpu.vector_store %arg4[%c96, %c0_125], %73 {strides = array<i32>} : memref<200x512xbf16, #tpu.memory_space<vmem>>, vector<8x256xbf16>,
    %c0_126 = arith.constant 0 : index
    %c1_127 = arith.constant 1 : index
    %c0_128 = arith.constant 0 : index
    %c34_129 = arith.constant 34 : index
    %75 = vector.load %arg2[%c0_126, %c1_127, %c0_128, %c34_129] : memref<1x2x8x384xbf16, #tpu.memory_space<vmem>>, vector<1x1x8x256xbf16>
    %76 = vector.shape_cast %75 : vector<1x1x8x256xbf16> to vector<8x256xbf16>
    %c96_130 = arith.constant 96 : index
    %c256_131 = arith.constant 256 : index
    %77 = vector.load %arg4[%c96_130, %c256_131] : memref<200x512xbf16, #tpu.memory_space<vmem>>, vector<8x256xbf16>
    tpu.vector_store %arg4[%c96_130, %c256_131], %76 {strides = array<i32>} : memref<200x512xbf16, #tpu.memory_space<vmem>>, vector<8x256xbf16>,
    %c0_132 = arith.constant 0 : index
    %c0_133 = arith.constant 0 : index
    %c0_134 = arith.constant 0 : index
    %c35 = arith.constant 35 : index
    %78 = vector.load %arg2[%c0_132, %c0_133, %c0_134, %c35] : memref<1x2x8x384xbf16, #tpu.memory_space<vmem>>, vector<1x1x8x256xbf16>
    %79 = vector.shape_cast %78 : vector<1x1x8x256xbf16> to vector<8x256xbf16>
    %c104 = arith.constant 104 : index
    %c0_135 = arith.constant 0 : index
    %80 = vector.load %arg4[%c104, %c0_135] : memref<200x512xbf16, #tpu.memory_space<vmem>>, vector<8x256xbf16>
    tpu.vector_store %arg4[%c104, %c0_135], %79 {strides = array<i32>} : memref<200x512xbf16, #tpu.memory_space<vmem>>, vector<8x256xbf16>,
    %c0_136 = arith.constant 0 : index
    %c1_137 = arith.constant 1 : index
    %c0_138 = arith.constant 0 : index
    %c35_139 = arith.constant 35 : index
    %81 = vector.load %arg2[%c0_136, %c1_137, %c0_138, %c35_139] : memref<1x2x8x384xbf16, #tpu.memory_space<vmem>>, vector<1x1x8x256xbf16>
    %82 = vector.shape_cast %81 : vector<1x1x8x256xbf16> to vector<8x256xbf16>
    %c104_140 = arith.constant 104 : index
    %c256_141 = arith.constant 256 : index
    %83 = vector.load %arg4[%c104_140, %c256_141] : memref<200x512xbf16, #tpu.memory_space<vmem>>, vector<8x256xbf16>
    tpu.vector_store %arg4[%c104_140, %c256_141], %82 {strides = array<i32>} : memref<200x512xbf16, #tpu.memory_space<vmem>>, vector<8x256xbf16>,
    %c0_142 = arith.constant 0 : index
    %c0_143 = arith.constant 0 : index
    %c0_144 = arith.constant 0 : index
    %c36 = arith.constant 36 : index
    %84 = vector.load %arg2[%c0_142, %c0_143, %c0_144, %c36] : memref<1x2x8x384xbf16, #tpu.memory_space<vmem>>, vector<1x1x8x256xbf16>
    %85 = vector.shape_cast %84 : vector<1x1x8x256xbf16> to vector<8x256xbf16>
    %c112 = arith.constant 112 : index
    %c0_145 = arith.constant 0 : index
    %86 = vector.load %arg4[%c112, %c0_145] : memref<200x512xbf16, #tpu.memory_space<vmem>>, vector<8x256xbf16>
    tpu.vector_store %arg4[%c112, %c0_145], %85 {strides = array<i32>} : memref<200x512xbf16, #tpu.memory_space<vmem>>, vector<8x256xbf16>,
    %c0_146 = arith.constant 0 : index
    %c1_147 = arith.constant 1 : index
    %c0_148 = arith.constant 0 : index
    %c36_149 = arith.constant 36 : index
    %87 = vector.load %arg2[%c0_146, %c1_147, %c0_148, %c36_149] : memref<1x2x8x384xbf16, #tpu.memory_space<vmem>>, vector<1x1x8x256xbf16>
    %88 = vector.shape_cast %87 : vector<1x1x8x256xbf16> to vector<8x256xbf16>
    %c112_150 = arith.constant 112 : index
    %c256_151 = arith.constant 256 : index
    %89 = vector.load %arg4[%c112_150, %c256_151] : memref<200x512xbf16, #tpu.memory_space<vmem>>, vector<8x256xbf16>
    tpu.vector_store %arg4[%c112_150, %c256_151], %88 {strides = array<i32>} : memref<200x512xbf16, #tpu.memory_space<vmem>>, vector<8x256xbf16>,
    %c0_152 = arith.constant 0 : index
    %c0_153 = arith.constant 0 : index
    %c0_154 = arith.constant 0 : index
    %c48_155 = arith.constant 48 : index
    %90 = vector.load %arg2[%c0_152, %c0_153, %c0_154, %c48_155] : memref<1x2x8x384xbf16, #tpu.memory_space<vmem>>, vector<1x1x8x256xbf16>
    %91 = vector.shape_cast %90 : vector<1x1x8x256xbf16> to vector<8x256xbf16>
    %c120 = arith.constant 120 : index
    %c0_156 = arith.constant 0 : index
    %92 = vector.load %arg4[%c120, %c0_156] : memref<200x512xbf16, #tpu.memory_space<vmem>>, vector<8x256xbf16>
    tpu.vector_store %arg4[%c120, %c0_156], %91 {strides = array<i32>} : memref<200x512xbf16, #tpu.memory_space<vmem>>, vector<8x256xbf16>,
    %c0_157 = arith.constant 0 : index
    %c1_158 = arith.constant 1 : index
    %c0_159 = arith.constant 0 : index
    %c48_160 = arith.constant 48 : index
    %93 = vector.load %arg2[%c0_157, %c1_158, %c0_159, %c48_160] : memref<1x2x8x384xbf16, #tpu.memory_space<vmem>>, vector<1x1x8x256xbf16>
    %94 = vector.shape_cast %93 : vector<1x1x8x256xbf16> to vector<8x256xbf16>
    %c120_161 = arith.constant 120 : index
    %c256_162 = arith.constant 256 : index
    %95 = vector.load %arg4[%c120_161, %c256_162] : memref<200x512xbf16, #tpu.memory_space<vmem>>, vector<8x256xbf16>
    tpu.vector_store %arg4[%c120_161, %c256_162], %94 {strides = array<i32>} : memref<200x512xbf16, #tpu.memory_space<vmem>>, vector<8x256xbf16>,
    %c0_163 = arith.constant 0 : index
    %c0_164 = arith.constant 0 : index
    %c0_165 = arith.constant 0 : index
    %c49 = arith.constant 49 : index
    %96 = vector.load %arg2[%c0_163, %c0_164, %c0_165, %c49] : memref<1x2x8x384xbf16, #tpu.memory_space<vmem>>, vector<1x1x8x256xbf16>
    %97 = vector.shape_cast %96 : vector<1x1x8x256xbf16> to vector<8x256xbf16>
    %c128 = arith.constant 128 : index
    %c0_166 = arith.constant 0 : index
    %98 = vector.load %arg4[%c128, %c0_166] : memref<200x512xbf16, #tpu.memory_space<vmem>>, vector<8x256xbf16>
    tpu.vector_store %arg4[%c128, %c0_166], %97 {strides = array<i32>} : memref<200x512xbf16, #tpu.memory_space<vmem>>, vector<8x256xbf16>,
    %c0_167 = arith.constant 0 : index
    %c1_168 = arith.constant 1 : index
    %c0_169 = arith.constant 0 : index
    %c49_170 = arith.constant 49 : index
    %99 = vector.load %arg2[%c0_167, %c1_168, %c0_169, %c49_170] : memref<1x2x8x384xbf16, #tpu.memory_space<vmem>>, vector<1x1x8x256xbf16>
    %100 = vector.shape_cast %99 : vector<1x1x8x256xbf16> to vector<8x256xbf16>
    %c128_171 = arith.constant 128 : index
    %c256_172 = arith.constant 256 : index
    %101 = vector.load %arg4[%c128_171, %c256_172] : memref<200x512xbf16, #tpu.memory_space<vmem>>, vector<8x256xbf16>
    tpu.vector_store %arg4[%c128_171, %c256_172], %100 {strides = array<i32>} : memref<200x512xbf16, #tpu.memory_space<vmem>>, vector<8x256xbf16>,
    %c0_173 = arith.constant 0 : index
    %c0_174 = arith.constant 0 : index
    %c0_175 = arith.constant 0 : index
    %c50 = arith.constant 50 : index
    %102 = vector.load %arg2[%c0_173, %c0_174, %c0_175, %c50] : memref<1x2x8x384xbf16, #tpu.memory_space<vmem>>, vector<1x1x8x256xbf16>
    %103 = vector.shape_cast %102 : vector<1x1x8x256xbf16> to vector<8x256xbf16>
    %c136 = arith.constant 136 : index
    %c0_176 = arith.constant 0 : index
    %104 = vector.load %arg4[%c136, %c0_176] : memref<200x512xbf16, #tpu.memory_space<vmem>>, vector<8x256xbf16>
    tpu.vector_store %arg4[%c136, %c0_176], %103 {strides = array<i32>} : memref<200x512xbf16, #tpu.memory_space<vmem>>, vector<8x256xbf16>,
    %c0_177 = arith.constant 0 : index
    %c1_178 = arith.constant 1 : index
    %c0_179 = arith.constant 0 : index
    %c50_180 = arith.constant 50 : index
    %105 = vector.load %arg2[%c0_177, %c1_178, %c0_179, %c50_180] : memref<1x2x8x384xbf16, #tpu.memory_space<vmem>>, vector<1x1x8x256xbf16>
    %106 = vector.shape_cast %105 : vector<1x1x8x256xbf16> to vector<8x256xbf16>
    %c136_181 = arith.constant 136 : index
    %c256_182 = arith.constant 256 : index
    %107 = vector.load %arg4[%c136_181, %c256_182] : memref<200x512xbf16, #tpu.memory_space<vmem>>, vector<8x256xbf16>
    tpu.vector_store %arg4[%c136_181, %c256_182], %106 {strides = array<i32>} : memref<200x512xbf16, #tpu.memory_space<vmem>>, vector<8x256xbf16>,
    %c0_183 = arith.constant 0 : index
    %c0_184 = arith.constant 0 : index
    %c0_185 = arith.constant 0 : index
    %c51 = arith.constant 51 : index
    %108 = vector.load %arg2[%c0_183, %c0_184, %c0_185, %c51] : memref<1x2x8x384xbf16, #tpu.memory_space<vmem>>, vector<1x1x8x256xbf16>
    %109 = vector.shape_cast %108 : vector<1x1x8x256xbf16> to vector<8x256xbf16>
    %c144 = arith.constant 144 : index
    %c0_186 = arith.constant 0 : index
    %110 = vector.load %arg4[%c144, %c0_186] : memref<200x512xbf16, #tpu.memory_space<vmem>>, vector<8x256xbf16>
    tpu.vector_store %arg4[%c144, %c0_186], %109 {strides = array<i32>} : memref<200x512xbf16, #tpu.memory_space<vmem>>, vector<8x256xbf16>,
    %c0_187 = arith.constant 0 : index
    %c1_188 = arith.constant 1 : index
    %c0_189 = arith.constant 0 : index
    %c51_190 = arith.constant 51 : index
    %111 = vector.load %arg2[%c0_187, %c1_188, %c0_189, %c51_190] : memref<1x2x8x384xbf16, #tpu.memory_space<vmem>>, vector<1x1x8x256xbf16>
    %112 = vector.shape_cast %111 : vector<1x1x8x256xbf16> to vector<8x256xbf16>
    %c144_191 = arith.constant 144 : index
    %c256_192 = arith.constant 256 : index
    %113 = vector.load %arg4[%c144_191, %c256_192] : memref<200x512xbf16, #tpu.memory_space<vmem>>, vector<8x256xbf16>
    tpu.vector_store %arg4[%c144_191, %c256_192], %112 {strides = array<i32>} : memref<200x512xbf16, #tpu.memory_space<vmem>>, vector<8x256xbf16>,
    %c0_193 = arith.constant 0 : index
    %c0_194 = arith.constant 0 : index
    %c0_195 = arith.constant 0 : index
    %c52 = arith.constant 52 : index
    %114 = vector.load %arg2[%c0_193, %c0_194, %c0_195, %c52] : memref<1x2x8x384xbf16, #tpu.memory_space<vmem>>, vector<1x1x8x256xbf16>
    %115 = vector.shape_cast %114 : vector<1x1x8x256xbf16> to vector<8x256xbf16>
    %c152 = arith.constant 152 : index
    %c0_196 = arith.constant 0 : index
    %116 = vector.load %arg4[%c152, %c0_196] : memref<200x512xbf16, #tpu.memory_space<vmem>>, vector<8x256xbf16>
    tpu.vector_store %arg4[%c152, %c0_196], %115 {strides = array<i32>} : memref<200x512xbf16, #tpu.memory_space<vmem>>, vector<8x256xbf16>,
    %c0_197 = arith.constant 0 : index
    %c1_198 = arith.constant 1 : index
    %c0_199 = arith.constant 0 : index
    %c52_200 = arith.constant 52 : index
    %117 = vector.load %arg2[%c0_197, %c1_198, %c0_199, %c52_200] : memref<1x2x8x384xbf16, #tpu.memory_space<vmem>>, vector<1x1x8x256xbf16>
    %118 = vector.shape_cast %117 : vector<1x1x8x256xbf16> to vector<8x256xbf16>
    %c152_201 = arith.constant 152 : index
    %c256_202 = arith.constant 256 : index
    %119 = vector.load %arg4[%c152_201, %c256_202] : memref<200x512xbf16, #tpu.memory_space<vmem>>, vector<8x256xbf16>
    tpu.vector_store %arg4[%c152_201, %c256_202], %118 {strides = array<i32>} : memref<200x512xbf16, #tpu.memory_space<vmem>>, vector<8x256xbf16>,
    %c0_203 = arith.constant 0 : index
    %c0_204 = arith.constant 0 : index
    %c0_205 = arith.constant 0 : index
    %c64_206 = arith.constant 64 : index
    %120 = vector.load %arg2[%c0_203, %c0_204, %c0_205, %c64_206] : memref<1x2x8x384xbf16, #tpu.memory_space<vmem>>, vector<1x1x8x256xbf16>
    %121 = vector.shape_cast %120 : vector<1x1x8x256xbf16> to vector<8x256xbf16>
    %c160 = arith.constant 160 : index
    %c0_207 = arith.constant 0 : index
    %122 = vector.load %arg4[%c160, %c0_207] : memref<200x512xbf16, #tpu.memory_space<vmem>>, vector<8x256xbf16>
    tpu.vector_store %arg4[%c160, %c0_207], %121 {strides = array<i32>} : memref<200x512xbf16, #tpu.memory_space<vmem>>, vector<8x256xbf16>,
    %c0_208 = arith.constant 0 : index
    %c1_209 = arith.constant 1 : index
    %c0_210 = arith.constant 0 : index
    %c64_211 = arith.constant 64 : index
    %123 = vector.load %arg2[%c0_208, %c1_209, %c0_210, %c64_211] : memref<1x2x8x384xbf16, #tpu.memory_space<vmem>>, vector<1x1x8x256xbf16>
    %124 = vector.shape_cast %123 : vector<1x1x8x256xbf16> to vector<8x256xbf16>
    %c160_212 = arith.constant 160 : index
    %c256_213 = arith.constant 256 : index
    %125 = vector.load %arg4[%c160_212, %c256_213] : memref<200x512xbf16, #tpu.memory_space<vmem>>, vector<8x256xbf16>
    tpu.vector_store %arg4[%c160_212, %c256_213], %124 {strides = array<i32>} : memref<200x512xbf16, #tpu.memory_space<vmem>>, vector<8x256xbf16>,
    %c0_214 = arith.constant 0 : index
    %c0_215 = arith.constant 0 : index
    %c0_216 = arith.constant 0 : index
    %c65 = arith.constant 65 : index
    %126 = vector.load %arg2[%c0_214, %c0_215, %c0_216, %c65] : memref<1x2x8x384xbf16, #tpu.memory_space<vmem>>, vector<1x1x8x256xbf16>
    %127 = vector.shape_cast %126 : vector<1x1x8x256xbf16> to vector<8x256xbf16>
    %c168 = arith.constant 168 : index
    %c0_217 = arith.constant 0 : index
    %128 = vector.load %arg4[%c168, %c0_217] : memref<200x512xbf16, #tpu.memory_space<vmem>>, vector<8x256xbf16>
    tpu.vector_store %arg4[%c168, %c0_217], %127 {strides = array<i32>} : memref<200x512xbf16, #tpu.memory_space<vmem>>, vector<8x256xbf16>,
    %c0_218 = arith.constant 0 : index
    %c1_219 = arith.constant 1 : index
    %c0_220 = arith.constant 0 : index
    %c65_221 = arith.constant 65 : index
    %129 = vector.load %arg2[%c0_218, %c1_219, %c0_220, %c65_221] : memref<1x2x8x384xbf16, #tpu.memory_space<vmem>>, vector<1x1x8x256xbf16>
    %130 = vector.shape_cast %129 : vector<1x1x8x256xbf16> to vector<8x256xbf16>
    %c168_222 = arith.constant 168 : index
    %c256_223 = arith.constant 256 : index
    %131 = vector.load %arg4[%c168_222, %c256_223] : memref<200x512xbf16, #tpu.memory_space<vmem>>, vector<8x256xbf16>
    tpu.vector_store %arg4[%c168_222, %c256_223], %130 {strides = array<i32>} : memref<200x512xbf16, #tpu.memory_space<vmem>>, vector<8x256xbf16>,
    %c0_224 = arith.constant 0 : index
    %c0_225 = arith.constant 0 : index
    %c0_226 = arith.constant 0 : index
    %c66 = arith.constant 66 : index
    %132 = vector.load %arg2[%c0_224, %c0_225, %c0_226, %c66] : memref<1x2x8x384xbf16, #tpu.memory_space<vmem>>, vector<1x1x8x256xbf16>
    %133 = vector.shape_cast %132 : vector<1x1x8x256xbf16> to vector<8x256xbf16>
    %c176 = arith.constant 176 : index
    %c0_227 = arith.constant 0 : index
    %134 = vector.load %arg4[%c176, %c0_227] : memref<200x512xbf16, #tpu.memory_space<vmem>>, vector<8x256xbf16>
    tpu.vector_store %arg4[%c176, %c0_227], %133 {strides = array<i32>} : memref<200x512xbf16, #tpu.memory_space<vmem>>, vector<8x256xbf16>,
    %c0_228 = arith.constant 0 : index
    %c1_229 = arith.constant 1 : index
    %c0_230 = arith.constant 0 : index
    %c66_231 = arith.constant 66 : index
    %135 = vector.load %arg2[%c0_228, %c1_229, %c0_230, %c66_231] : memref<1x2x8x384xbf16, #tpu.memory_space<vmem>>, vector<1x1x8x256xbf16>
    %136 = vector.shape_cast %135 : vector<1x1x8x256xbf16> to vector<8x256xbf16>
    %c176_232 = arith.constant 176 : index
    %c256_233 = arith.constant 256 : index
    %137 = vector.load %arg4[%c176_232, %c256_233] : memref<200x512xbf16, #tpu.memory_space<vmem>>, vector<8x256xbf16>
    tpu.vector_store %arg4[%c176_232, %c256_233], %136 {strides = array<i32>} : memref<200x512xbf16, #tpu.memory_space<vmem>>, vector<8x256xbf16>,
    %c0_234 = arith.constant 0 : index
    %c0_235 = arith.constant 0 : index
    %c0_236 = arith.constant 0 : index
    %c67 = arith.constant 67 : index
    %138 = vector.load %arg2[%c0_234, %c0_235, %c0_236, %c67] : memref<1x2x8x384xbf16, #tpu.memory_space<vmem>>, vector<1x1x8x256xbf16>
    %139 = vector.shape_cast %138 : vector<1x1x8x256xbf16> to vector<8x256xbf16>
    %c184 = arith.constant 184 : index
    %c0_237 = arith.constant 0 : index
    %140 = vector.load %arg4[%c184, %c0_237] : memref<200x512xbf16, #tpu.memory_space<vmem>>, vector<8x256xbf16>
    tpu.vector_store %arg4[%c184, %c0_237], %139 {strides = array<i32>} : memref<200x512xbf16, #tpu.memory_space<vmem>>, vector<8x256xbf16>,
    %c0_238 = arith.constant 0 : index
    %c1_239 = arith.constant 1 : index
    %c0_240 = arith.constant 0 : index
    %c67_241 = arith.constant 67 : index
    %141 = vector.load %arg2[%c0_238, %c1_239, %c0_240, %c67_241] : memref<1x2x8x384xbf16, #tpu.memory_space<vmem>>, vector<1x1x8x256xbf16>
    %142 = vector.shape_cast %141 : vector<1x1x8x256xbf16> to vector<8x256xbf16>
    %c184_242 = arith.constant 184 : index
    %c256_243 = arith.constant 256 : index
    %143 = vector.load %arg4[%c184_242, %c256_243] : memref<200x512xbf16, #tpu.memory_space<vmem>>, vector<8x256xbf16>
    tpu.vector_store %arg4[%c184_242, %c256_243], %142 {strides = array<i32>} : memref<200x512xbf16, #tpu.memory_space<vmem>>, vector<8x256xbf16>,
    %c0_244 = arith.constant 0 : index
    %c0_245 = arith.constant 0 : index
    %c0_246 = arith.constant 0 : index
    %c68 = arith.constant 68 : index
    %144 = vector.load %arg2[%c0_244, %c0_245, %c0_246, %c68] : memref<1x2x8x384xbf16, #tpu.memory_space<vmem>>, vector<1x1x8x256xbf16>
    %145 = vector.shape_cast %144 : vector<1x1x8x256xbf16> to vector<8x256xbf16>
    %c192 = arith.constant 192 : index
    %c0_247 = arith.constant 0 : index
    %146 = vector.load %arg4[%c192, %c0_247] : memref<200x512xbf16, #tpu.memory_space<vmem>>, vector<8x256xbf16>
    tpu.vector_store %arg4[%c192, %c0_247], %145 {strides = array<i32>} : memref<200x512xbf16, #tpu.memory_space<vmem>>, vector<8x256xbf16>,
    %c0_248 = arith.constant 0 : index
    %c1_249 = arith.constant 1 : index
    %c0_250 = arith.constant 0 : index
    %c68_251 = arith.constant 68 : index
    %147 = vector.load %arg2[%c0_248, %c1_249, %c0_250, %c68_251] : memref<1x2x8x384xbf16, #tpu.memory_space<vmem>>, vector<1x1x8x256xbf16>
    %148 = vector.shape_cast %147 : vector<1x1x8x256xbf16> to vector<8x256xbf16>
    %c192_252 = arith.constant 192 : index
    %c256_253 = arith.constant 256 : index
    %149 = vector.load %arg4[%c192_252, %c256_253] : memref<200x512xbf16, #tpu.memory_space<vmem>>, vector<8x256xbf16>
    tpu.vector_store %arg4[%c192_252, %c256_253], %148 {strides = array<i32>} : memref<200x512xbf16, #tpu.memory_space<vmem>>, vector<8x256xbf16>,
    %c0_254 = arith.constant 0 : index
    %c0_255 = arith.constant 0 : index
    %c0_256 = arith.constant 0 : index
    %150 = vector.load %arg1[%c0_254, %c0_255, %c0_256] : memref<1x4x200xbf16, #tpu.memory_space<vmem>>, vector<1x4x200xbf16>
    %151 = vector.shape_cast %150 : vector<1x4x200xbf16> to vector<4x200xbf16>
    %c0_257 = arith.constant 0 : index
    %c0_258 = arith.constant 0 : index
    %152 = vector.load %arg4[%c0_257, %c0_258] : memref<200x512xbf16, #tpu.memory_space<vmem>>, vector<200x512xbf16>
    %cst = arith.constant dense<0.000000e+00> : vector<4x512xf32>
    %153 = tpu.matmul %151, %152, %cst {dimension_numbers = #tpu.dot_dimension_numbers<[1], [0], [0], [1], [0, 0, 1, 1], [], []>} : vector<4x200xbf16>, vector<200x512xbf16>, vector<4x512xf32> -> vector<4x512xf32>
    %154 = vector.extract_strided_slice %153 {offsets = [0, 0], sizes = [4, 256], strides = [1, 1]} : vector<4x512xf32> to vector<4x256xf32>
    %c0_259 = arith.constant 0 : index
    %c0_260 = arith.constant 0 : index
    %c0_261 = arith.constant 0 : index
    %155 = vector.load %arg3[%c0_259, %c0_260, %c0_261] : memref<2x4x256xf32, #tpu.memory_space<vmem>>, vector<1x4x256xf32>
    %156 = vector.shape_cast %155 : vector<1x4x256xf32> to vector<4x256xf32>
    %157 = vector.shape_cast %154 : vector<4x256xf32> to vector<1x4x256xf32>
    tpu.vector_store %arg3[%c0_259, %c0_260, %c0_261], %157 {strides = array<i32>} : memref<2x4x256xf32, #tpu.memory_space<vmem>>, vector<1x4x256xf32>,
    %158 = vector.extract_strided_slice %153 {offsets = [0, 256], sizes = [4, 256], strides = [1, 1]} : vector<4x512xf32> to vector<4x256xf32>
    %c1_262 = arith.constant 1 : index
    %c0_263 = arith.constant 0 : index
    %c0_264 = arith.constant 0 : index
    %159 = vector.load %arg3[%c1_262, %c0_263, %c0_264] : memref<2x4x256xf32, #tpu.memory_space<vmem>>, vector<1x4x256xf32>
    %160 = vector.shape_cast %159 : vector<1x4x256xf32> to vector<4x256xf32>
    %161 = vector.shape_cast %158 : vector<4x256xf32> to vector<1x4x256xf32>
    tpu.vector_store %arg3[%c1_262, %c0_263, %c0_264], %161 {strides = array<i32>} : memref<2x4x256xf32, #tpu.memory_space<vmem>>, vector<1x4x256xf32>,
    return
  }
  func.func @transform_0(%arg0: i32) -> (i32, i32, i32) {
    %c0_i32 = arith.constant 0 : i32
    %c0_i32_0 = arith.constant 0 : i32
    %c0_i32_1 = arith.constant 0 : i32
    return %arg0, %c0_i32, %c0_i32_0 : i32, i32, i32
  }
  func.func @transform_1(%arg0: i32) -> (i32, i32, i32, i32) {
    %c0_i32 = arith.constant 0 : i32
    %c0_i32_0 = arith.constant 0 : i32
    %c0_i32_1 = arith.constant 0 : i32
    %c0_i32_2 = arith.constant 0 : i32
    return %arg0, %c0_i32, %c0_i32_0, %c0_i32_1 : i32, i32, i32, i32
  }
  func.func @transform_2(%arg0: i32) -> (i32, i32, i32) {
    %c0_i32 = arith.constant 0 : i32
    %c0_i32_0 = arith.constant 0 : i32
    %c0_i32_1 = arith.constant 0 : i32
    return %c0_i32, %c0_i32_0, %arg0 : i32, i32, i32
  }
}

</mosaic_0001>

<llo_original>
// kernel: tpu_custom_call.1
$region0: #{tpu_custom_call.1}
  #allocation0 [shape = 'u32[]', space=smem, size = 0x4, offset = 0x4, fixed_abs, tag = 'smem constant byte address 0x4 - core index']
  #allocation1 [shape = 'u32[144,128]{1,0:T(1,128)}', space=vmem, size = 0x12000, scoped, tag = 'internal scratch']
  #allocation2 [shape = 'bf16[200,512]{1,0:T(8,128)(2,1)}', space=vmem, size = 0x32000, scoped, tag = 'scratch operand']
  %s0 = inlined_call_operand.hbm [shape: bf16[9,4,200], index: 0, kind: input, shape index: {}]
  %s1 = inlined_call_operand.hbm [shape: bf16[9,2,8,384], index: 1, kind: input, shape index: {}]
  %s2 = inlined_call_operand.hbm [shape: f32[2,4,2304], index: 2, kind: output, shape index: {}]
  %s3 = sld [smem:[#allocation0]]
  $region49: #{tpu_custom_call.1} parent=0
    _
  %s5 = ssub.s32 1, %s3
  %s6 = scalar_select 0, %s5, %s3
  $region1: #{tpu_custom_call.1} parent=0
    #allocation3 [shape = 'u8[4096]{0}', space=vmem, size = 0x1000, scoped, tag = 'input window, operand 0']
    #allocation4 [shape = 's32[2]{0}', space=sflag, size = 0x8, scoped, tag = 'scoped memory for tpu_custom_call.1']
    #allocation5 [shape = 's32[2]{0}', space=sflag, size = 0x8, scoped, tag = 'scoped memory for tpu_custom_call.1']
    #allocation6 [shape = 'u8[24576]{0}', space=vmem, size = 0x6000, scoped, tag = 'input window, operand 1']
    #allocation7 [shape = 's32[2]{0}', space=sflag, size = 0x8, scoped, tag = 'scoped memory for tpu_custom_call.1']
    #allocation8 [shape = 'u8[16384]{0}', space=vmem, size = 0x4000, scoped, tag = 'output window, operand 0']
    %7 = vsyncpa [#allocation4], 0
    %s8 = scalar_lea.sflag [#allocation4], 1
    %9 = vsyncpa %s8, 0
    %10 = vsyncpa [#allocation7], 0
    %s11 = scalar_lea.sflag [#allocation7], 1
    %12 = vsyncpa %s11, 0
    %13 = vsyncpa [#allocation5], 0
    %s14 = scalar_lea.sflag [#allocation5], 1
    %15 = vsyncpa %s14, 0
    loop: start=0, step=1, limit=11
    $region2: #{tpu_custom_call.1} parent=1 // loop_pre_header
      _
    $region3: #{tpu_custom_call.1} parent=1 // loop_header
      %s17 = sphi 0, %s21
      %p18 = scmp.ge.s32.totalorder %s17, 11
      %s27 = sphi 0, %s29
      %s30 = sphi 0, %s27
      %s31 = sphi 0, %s30
      %s47 = sphi 0, %s31
      %s53 = sphi 0, %s55
      %s56 = sphi 0, %s53
      %s57 = sphi 0, %s56
      %s73 = sphi 0, %s57
      %s79 = sphi 0, %s81
      %s82 = sphi 0, %s79
      %s83 = sphi 0, %s82
      %s99 = sphi 0, %s83
    $region4: #{tpu_custom_call.1} parent=1 // loop_header_branch
      %20 = sbr.rel (%p18) target = $region8
    $region5: #{tpu_custom_call.1} parent=1 // loop_body
      %s22 = ssub.s32 %s17, 1
      %s23 = ssub.s32 %s17, 2
      %s24 = sadd.s32 %s17, 1
      %s25 = ssub.s32 %s17, %s24
      %p26 = scmp.eq.s32.totalorder %s25, 0
      %s28 = sadd.s32 %s27, 1
      %s29 = scalar_select %p26, %s27, %s28
      %p32 = pneg %p26
      %p33 = scmp.eq.s32.totalorder %s17, 8
      %p34 = por %p32, %p33
      %p35 = scmp.ne.s32.totalorder %s27, %s30
      %p36 = scmp.eq.s32.totalorder %s17, 0
      %p37 = por %p35, %p36
      %p38 = scmp.ne.s32.totalorder %s27, %s30
      %p39 = scmp.eq.s32.totalorder %s22, 8
      %p40 = por %p38, %p39
      %p41 = scmp.ne.s32.totalorder %s30, %s31
      %p42 = scmp.eq.s32.totalorder %s22, 0
      %p43 = por %p41, %p42
      %p44 = scmp.ne.s32.totalorder %s30, %s31
      %p45 = scmp.eq.s32.totalorder %s23, 8
      %p46 = por %p44, %p45
      %p48 = scmp.ne.s32.totalorder %s31, %s47
      %p49 = scmp.eq.s32.totalorder %s23, 0
      %p50 = por %p48, %p49
      %s51 = ssub.s32 %s17, %s24
      %p52 = scmp.eq.s32.totalorder %s51, 0
      %s54 = sadd.s32 %s53, 1
      %s55 = scalar_select %p52, %s53, %s54
      %p58 = pneg %p52
      %p59 = scmp.eq.s32.totalorder %s17, 8
      %p60 = por %p58, %p59
      %p61 = scmp.ne.s32.totalorder %s53, %s56
      %p62 = scmp.eq.s32.totalorder %s17, 0
      %p63 = por %p61, %p62
      %p64 = scmp.ne.s32.totalorder %s53, %s56
      %p65 = scmp.eq.s32.totalorder %s22, 8
      %p66 = por %p64, %p65
      %p67 = scmp.ne.s32.totalorder %s56, %s57
      %p68 = scmp.eq.s32.totalorder %s22, 0
      %p69 = por %p67, %p68
      %p70 = scmp.ne.s32.totalorder %s56, %s57
      %p71 = scmp.eq.s32.totalorder %s23, 8
      %p72 = por %p70, %p71
      %p74 = scmp.ne.s32.totalorder %s57, %s73
      %p75 = scmp.eq.s32.totalorder %s23, 0
      %p76 = por %p74, %p75
      %s77 = ssub.s32 %s17, %s24
      %p78 = scmp.eq.s32.totalorder %s77, 0
      %s80 = sadd.s32 %s79, 1
      %s81 = scalar_select %p78, %s79, %s80
      %p84 = pneg %p78
      %p85 = scmp.eq.s32.totalorder %s17, 8
      %p86 = por %p84, %p85
      %p87 = scmp.ne.s32.totalorder %s79, %s82
      %p88 = scmp.eq.s32.totalorder %s17, 0
      %p89 = por %p87, %p88
      %p90 = scmp.ne.s32.totalorder %s79, %s82
      %p91 = scmp.eq.s32.totalorder %s22, 8
      %p92 = por %p90, %p91
      %p93 = scmp.ne.s32.totalorder %s82, %s83
      %p94 = scmp.eq.s32.totalorder %s22, 0
      %p95 = por %p93, %p94
      %p96 = scmp.ne.s32.totalorder %s82, %s83
      %p97 = scmp.eq.s32.totalorder %s23, 8
      %p98 = por %p96, %p97
      %p100 = scmp.ne.s32.totalorder %s83, %s99
      %p101 = scmp.eq.s32.totalorder %s23, 0
      %p102 = por %p100, %p101
      %p103 = scmp.le.s32.totalorder 1, %s17
      %p104 = scmp.lt.s32.totalorder %s17, 10
      %p105 = pnand %p103, %p104
      %p106 = pneg %p105
      // Predicated region
      $region9: #{tpu_custom_call.1} parent=5 // pred_check
        _
      $region10: #{tpu_custom_call.1} parent=5 // pred_check_branch
        %108 = sbr.rel (%p105) target = $region12
      $region11: #{tpu_custom_call.1} parent=5 // pred_region
        %s109 = ssub.s32 %s17, 1
      $region12: #{tpu_custom_call.1} parent=5 // pred_fallthru
        _
      %p110 = scmp.lt.s32.totalorder %s17, 9
      // Predicated region
      $region13: #{tpu_custom_call.1} parent=5 // pred_check
        %p111 = pneg %p110
      $region14: #{tpu_custom_call.1} parent=5 // pred_check_branch
        %113 = sbr.rel (%p111) target = $region16
      $region15: #{tpu_custom_call.1} parent=5 // pred_region
        // Predicated region
        $region17: #{tpu_custom_call.1} parent=15 // pred_check
          %p114 = pneg %p37
        $region18: #{tpu_custom_call.1} parent=15 // pred_check_branch
          %116 = sbr.rel (%p114) target = $region20
        $region19: #{tpu_custom_call.1} parent=15 // pred_region
          %s117 = sand.u32 %s27, 1
          %s118 = scalar_lea.sflag [#allocation4], %s117
          %s119 = sand.u32 %s27, 1
          %s120 = smul.addr %s119, 4
          %s121 = scalar_lea.vmem [#allocation3], %s120
          %s123 = ssub.s32 64, 64
          %124 = vsyncadd %s118, %s123
          %s125 = smul.addr %s17, 2
          %s126 = smul.addr %s125, 32
          %s127 = scalar_lea.hbm %s0, %s126
          %s129 = sshll.u32 %s121, 4
          %s130 = int_to_ptr.vmem [resolvable:$true] %s129
          %132 = dma.hbm_to_vmem [thread:$0]  %s127, 64, %s130, %s118
        $region20: #{tpu_custom_call.1} parent=15 // pred_fallthru
          _
        // Predicated region
        $region21: #{tpu_custom_call.1} parent=15 // pred_check
          %p133 = pneg %p63
        $region22: #{tpu_custom_call.1} parent=15 // pred_check_branch
          %135 = sbr.rel (%p133) target = $region24
        $region23: #{tpu_custom_call.1} parent=15 // pred_region
          %s136 = sand.u32 %s53, 1
          %s137 = scalar_lea.sflag [#allocation7], %s136
          %s138 = sand.u32 %s53, 1
          %s139 = smul.addr %s138, 24
          %s140 = scalar_lea.vmem [#allocation6], %s139
          %s142 = ssub.s32 384, 384
          %143 = vsyncadd %s137, %s142
          %s144 = smul.addr %s17, 6
          %s145 = smul.addr %s144, 64
          %s146 = scalar_lea.hbm %s1, %s145
          %s147 = sshll.u32 %s140, 4
          %s148 = int_to_ptr.vmem [resolvable:$true] %s147
          %153 = dma.hbm_to_vmem [thread:$0]  %s146, 384, %s148, %s137, 192, 192, 12
        $region24: #{tpu_custom_call.1} parent=15 // pred_fallthru
          _
      $region16: #{tpu_custom_call.1} parent=5 // pred_fallthru
        _
      %p154 = scmp.le.s32.totalorder 1, %s17
      %p155 = scmp.lt.s32.totalorder %s17, 10
      %p156 = pnand %p154, %p155
      %p157 = pneg %p156
      // Predicated region
      $region25: #{tpu_custom_call.1} parent=5 // pred_check
        _
      $region26: #{tpu_custom_call.1} parent=5 // pred_check_branch
        %159 = sbr.rel (%p156) target = $region28
      $region27: #{tpu_custom_call.1} parent=5 // pred_region
        %s160 = ssub.s32 %s17, 1
        %s161 = sand.u32 %s30, 1
        %s162 = scalar_lea.sflag [#allocation4], %s161
        %s163 = sand.u32 %s30, 1
        %s164 = smul.addr %s163, 4
        %s165 = scalar_lea.vmem [#allocation3], %s164
        // Predicated region
        $region29: #{tpu_custom_call.1} parent=27 // pred_check
          %p166 = pneg %p43
        $region30: #{tpu_custom_call.1} parent=27 // pred_check_branch
          %168 = sbr.rel (%p166) target = $region32
        $region31: #{tpu_custom_call.1} parent=27 // pred_region
          %169 = dma.done %s162, 64
        $region32: #{tpu_custom_call.1} parent=27 // pred_fallthru
          _
        %s170 = sand.u32 %s56, 1
        %s171 = scalar_lea.sflag [#allocation7], %s170
        %s172 = sand.u32 %s56, 1
        %s173 = smul.addr %s172, 24
        %s174 = scalar_lea.vmem [#allocation6], %s173
        // Predicated region
        $region33: #{tpu_custom_call.1} parent=27 // pred_check
          %p175 = pneg %p69
        $region34: #{tpu_custom_call.1} parent=27 // pred_check_branch
          %177 = sbr.rel (%p175) target = $region36
        $region35: #{tpu_custom_call.1} parent=27 // pred_region
          %178 = dma.done %s171, 384
        $region36: #{tpu_custom_call.1} parent=27 // pred_fallthru
          _
        %s179 = sand.u32 %s30, 1
        %s180 = scalar_lea.sflag [#allocation4], %s179
        %s181 = sand.u32 %s30, 1
        %s182 = smul.addr %s181, 4
        %s183 = scalar_lea.vmem [#allocation3], %s182
        %p184 = pneg %p43
        %p185 = pneg %p40
        %s186 = sand.u32 %s56, 1
        %s187 = scalar_lea.sflag [#allocation7], %s186
        %s188 = sand.u32 %s56, 1
        %s189 = smul.addr %s188, 24
        %s190 = scalar_lea.vmem [#allocation6], %s189
        %p191 = pneg %p69
        %p192 = pneg %p66
        %p193 = pneg %p95
        %p194 = pneg %p92
        %s195 = sand.u32 %s82, 1
        %s196 = scalar_lea.sflag [#allocation5], %s195
        %s197 = sand.u32 %s82, 1
        %s198 = smul.addr %s197, 16
        %s199 = scalar_lea.vmem [#allocation8], %s198
        %s200 = smul.u32 2, %s22
        %v202 = vld [vmem:[%s174] sm:$0xff]
        %203 = vst [vmem:[#allocation2] sm:$0xff] %v202
        %s204 = scalar_lea.vmem %s174, 12 [#allocation6]
        %v205 = vld [vmem:[%s204] sm:$0xff]
        %206 = vst [vmem:[#allocation2 + $0x8] sm:$0xff] %v205
        %v207 = vld [vmem:[%s174] sm:$0xff]
        %v208 = vld [vmem:[%s174 + $0x8] sm:$0xf]
        %211 = vrot.lane.b32.xlu0 %v207, 127
        %v212 = vpop.permute.xlu0 %211
        %213 = vrot.lane.b32.xlu0 %v208, 127
        %v214 = vpop.permute.xlu0 %213
        %v215 = vrot.slane %v212, 4
        %v216 = vrot.slane %v214, 4
        %vm217 = vcmask 1043456
        %v218 = vsel %vm217, %v215, %v216
        %vm219 = vcmask 1039360
        %v220 = vsel %vm219, %v212, %v218
        %222 = vst [vmem:[#allocation2 + $0x10] sm:$0xff] %v220
        %v223 = vld [vmem:[%s204] sm:$0xff]
        %v224 = vld [vmem:[%s204 + $0x8] sm:$0xf]
        %227 = vrot.lane.b32.xlu0 %v223, 127
        %v228 = vpop.permute.xlu0 %227
        %229 = vrot.lane.b32.xlu0 %v224, 127
        %v230 = vpop.permute.xlu0 %229
        %v231 = vrot.slane %v228, 4
        %v232 = vrot.slane %v230, 4
        %v233 = vsel %vm217, %v231, %v232
        %v234 = vsel %vm219, %v228, %v233
        %236 = vst [vmem:[#allocation2 + $0x18] sm:$0xff] %v234
        %v237 = vld [vmem:[%s174] sm:$0xff]
        %v238 = vld [vmem:[%s174 + $0x8] sm:$0xf]
        %241 = vrot.lane.b32.xlu0 %v237, 126
        %v242 = vpop.permute.xlu0 %241
        %243 = vrot.lane.b32.xlu0 %v238, 126
        %v244 = vpop.permute.xlu0 %243
        %v245 = vrot.slane %v242, 4
        %v246 = vrot.slane %v244, 4
        %v247 = vsel %vm217, %v245, %v246
        %vm248 = vcmask 1031168
        %v249 = vsel %vm248, %v242, %v247
        %251 = vst [vmem:[#allocation2 + $0x20] sm:$0xff] %v249
        %v252 = vld [vmem:[%s204] sm:$0xff]
        %v253 = vld [vmem:[%s204 + $0x8] sm:$0xf]
        %256 = vrot.lane.b32.xlu0 %v252, 126
        %v257 = vpop.permute.xlu0 %256
        %258 = vrot.lane.b32.xlu0 %v253, 126
        %v259 = vpop.permute.xlu0 %258
        %v260 = vrot.slane %v257, 4
        %v261 = vrot.slane %v259, 4
        %v262 = vsel %vm217, %v260, %v261
        %v263 = vsel %vm248, %v257, %v262
        %265 = vst [vmem:[#allocation2 + $0x28] sm:$0xff] %v263
        %v266 = vld [vmem:[%s174] sm:$0xff]
        %v267 = vld [vmem:[%s174 + $0x8] sm:$0xf]
        %270 = vrot.lane.b32.xlu0 %v266, 125
        %v271 = vpop.permute.xlu0 %270
        %272 = vrot.lane.b32.xlu0 %v267, 125
        %v273 = vpop.permute.xlu0 %272
        %v274 = vrot.slane %v271, 4
        %v275 = vrot.slane %v273, 4
        %v276 = vsel %vm217, %v274, %v275
        %vm277 = vcmask 1022976
        %v278 = vsel %vm277, %v271, %v276
        %280 = vst [vmem:[#allocation2 + $0x30] sm:$0xff] %v278
        %v281 = vld [vmem:[%s204] sm:$0xff]
        %v282 = vld [vmem:[%s204 + $0x8] sm:$0xf]
        %285 = vrot.lane.b32.xlu0 %v281, 125
        %v286 = vpop.permute.xlu0 %285
        %287 = vrot.lane.b32.xlu0 %v282, 125
        %v288 = vpop.permute.xlu0 %287
        %v289 = vrot.slane %v286, 4
        %v290 = vrot.slane %v288, 4
        %v291 = vsel %vm217, %v289, %v290
        %v292 = vsel %vm277, %v286, %v291
        %294 = vst [vmem:[#allocation2 + $0x38] sm:$0xff] %v292
        %v295 = vld [vmem:[%s174] sm:$0xff]
        %v296 = vld [vmem:[%s174 + $0x8] sm:$0xf]
        %299 = vrot.lane.b32.xlu0 %v295, 124
        %v300 = vpop.permute.xlu0 %299
        %301 = vrot.lane.b32.xlu0 %v296, 124
        %v302 = vpop.permute.xlu0 %301
        %v303 = vrot.slane %v300, 4
        %v304 = vrot.slane %v302, 4
        %v305 = vsel %vm217, %v303, %v304
        %vm306 = vcmask 1014784
        %v307 = vsel %vm306, %v300, %v305
        %309 = vst [vmem:[#allocation2 + $0x40] sm:$0xff] %v307
        %v310 = vld [vmem:[%s204] sm:$0xff]
        %v311 = vld [vmem:[%s204 + $0x8] sm:$0xf]
        %314 = vrot.lane.b32.xlu0 %v310, 124
        %v315 = vpop.permute.xlu0 %314
        %316 = vrot.lane.b32.xlu0 %v311, 124
        %v317 = vpop.permute.xlu0 %316
        %v318 = vrot.slane %v315, 4
        %v319 = vrot.slane %v317, 4
        %v320 = vsel %vm217, %v318, %v319
        %v321 = vsel %vm306, %v315, %v320
        %323 = vst [vmem:[#allocation2 + $0x48] sm:$0xff] %v321
        %v324 = vld [vmem:[%s174] sm:$0xff]
        %v325 = vld [vmem:[%s174 + $0x8] sm:$0xf]
        %328 = vrot.lane.b32.xlu0 %v324, 112
        %v329 = vpop.permute.xlu0 %328
        %330 = vrot.lane.b32.xlu0 %v325, 112
        %v331 = vpop.permute.xlu0 %330
        %v332 = vrot.slane %v329, 4
        %v333 = vrot.slane %v331, 4
        %v334 = vsel %vm217, %v332, %v333
        %vm335 = vcmask 916480
        %v336 = vsel %vm335, %v329, %v334
        %338 = vst [vmem:[#allocation2 + $0x50] sm:$0xff] %v336
        %v339 = vld [vmem:[%s204] sm:$0xff]
        %v340 = vld [vmem:[%s204 + $0x8] sm:$0xf]
        %343 = vrot.lane.b32.xlu0 %v339, 112
        %v344 = vpop.permute.xlu0 %343
        %345 = vrot.lane.b32.xlu0 %v340, 112
        %v346 = vpop.permute.xlu0 %345
        %v347 = vrot.slane %v344, 4
        %v348 = vrot.slane %v346, 4
        %v349 = vsel %vm217, %v347, %v348
        %v350 = vsel %vm335, %v344, %v349
        %352 = vst [vmem:[#allocation2 + $0x58] sm:$0xff] %v350
        %v353 = vld [vmem:[%s174] sm:$0xff]
        %v354 = vld [vmem:[%s174 + $0x8] sm:$0xf]
        %357 = vrot.lane.b32.xlu0 %v353, 111
        %v358 = vpop.permute.xlu0 %357
        %359 = vrot.lane.b32.xlu0 %v354, 111
        %v360 = vpop.permute.xlu0 %359
        %v361 = vrot.slane %v358, 4
        %v362 = vrot.slane %v360, 4
        %v363 = vsel %vm217, %v361, %v362
        %vm364 = vcmask 908288
        %v365 = vsel %vm364, %v358, %v363
        %367 = vst [vmem:[#allocation2 + $0x60] sm:$0xff] %v365
        %v368 = vld [vmem:[%s204] sm:$0xff]
        %v369 = vld [vmem:[%s204 + $0x8] sm:$0xf]
        %372 = vrot.lane.b32.xlu0 %v368, 111
        %v373 = vpop.permute.xlu0 %372
        %374 = vrot.lane.b32.xlu0 %v369, 111
        %v375 = vpop.permute.xlu0 %374
        %v376 = vrot.slane %v373, 4
        %v377 = vrot.slane %v375, 4
        %v378 = vsel %vm217, %v376, %v377
        %v379 = vsel %vm364, %v373, %v378
        %381 = vst [vmem:[#allocation2 + $0x68] sm:$0xff] %v379
        %v382 = vld [vmem:[%s174] sm:$0xff]
        %v383 = vld [vmem:[%s174 + $0x8] sm:$0xf]
        %386 = vrot.lane.b32.xlu0 %v382, 110
        %v387 = vpop.permute.xlu0 %386
        %388 = vrot.lane.b32.xlu0 %v383, 110
        %v389 = vpop.permute.xlu0 %388
        %v390 = vrot.slane %v387, 4
        %v391 = vrot.slane %v389, 4
        %v392 = vsel %vm217, %v390, %v391
        %vm393 = vcmask 900096
        %v394 = vsel %vm393, %v387, %v392
        %396 = vst [vmem:[#allocation2 + $0x70] sm:$0xff] %v394
        %v397 = vld [vmem:[%s204] sm:$0xff]
        %v398 = vld [vmem:[%s204 + $0x8] sm:$0xf]
        %401 = vrot.lane.b32.xlu0 %v397, 110
        %v402 = vpop.permute.xlu0 %401
        %403 = vrot.lane.b32.xlu0 %v398, 110
        %v404 = vpop.permute.xlu0 %403
        %v405 = vrot.slane %v402, 4
        %v406 = vrot.slane %v404, 4
        %v407 = vsel %vm217, %v405, %v406
        %v408 = vsel %vm393, %v402, %v407
        %410 = vst [vmem:[#allocation2 + $0x78] sm:$0xff] %v408
        %v411 = vld [vmem:[%s174] sm:$0xff]
        %v412 = vld [vmem:[%s174 + $0x8] sm:$0xf]
        %415 = vrot.lane.b32.xlu0 %v411, 109
        %v416 = vpop.permute.xlu0 %415
        %417 = vrot.lane.b32.xlu0 %v412, 109
        %v418 = vpop.permute.xlu0 %417
        %v419 = vrot.slane %v416, 4
        %v420 = vrot.slane %v418, 4
        %v421 = vsel %vm217, %v419, %v420
        %vm422 = vcmask 891904
        %v423 = vsel %vm422, %v416, %v421
        %425 = vst [vmem:[#allocation2 + $0x80] sm:$0xff] %v423
        %v426 = vld [vmem:[%s204] sm:$0xff]
        %v427 = vld [vmem:[%s204 + $0x8] sm:$0xf]
        %430 = vrot.lane.b32.xlu0 %v426, 109
        %v431 = vpop.permute.xlu0 %430
        %432 = vrot.lane.b32.xlu0 %v427, 109
        %v433 = vpop.permute.xlu0 %432
        %v434 = vrot.slane %v431, 4
        %v435 = vrot.slane %v433, 4
        %v436 = vsel %vm217, %v434, %v435
        %v437 = vsel %vm422, %v431, %v436
        %439 = vst [vmem:[#allocation2 + $0x88] sm:$0xff] %v437
        %v440 = vld [vmem:[%s174] sm:$0xff]
        %v441 = vld [vmem:[%s174 + $0x8] sm:$0xf]
        %444 = vrot.lane.b32.xlu0 %v440, 108
        %v445 = vpop.permute.xlu0 %444
        %446 = vrot.lane.b32.xlu0 %v441, 108
        %v447 = vpop.permute.xlu0 %446
        %v448 = vrot.slane %v445, 4
        %v449 = vrot.slane %v447, 4
        %v450 = vsel %vm217, %v448, %v449
        %vm451 = vcmask 883712
        %v452 = vsel %vm451, %v445, %v450
        %454 = vst [vmem:[#allocation2 + $0x90] sm:$0xff] %v452
        %v455 = vld [vmem:[%s204] sm:$0xff]
        %v456 = vld [vmem:[%s204 + $0x8] sm:$0xf]
        %459 = vrot.lane.b32.xlu0 %v455, 108
        %v460 = vpop.permute.xlu0 %459
        %461 = vrot.lane.b32.xlu0 %v456, 108
        %v462 = vpop.permute.xlu0 %461
        %v463 = vrot.slane %v460, 4
        %v464 = vrot.slane %v462, 4
        %v465 = vsel %vm217, %v463, %v464
        %v466 = vsel %vm451, %v460, %v465
        %468 = vst [vmem:[#allocation2 + $0x98] sm:$0xff] %v466
        %v469 = vld [vmem:[%s174] sm:$0xff]
        %v470 = vld [vmem:[%s174 + $0x8] sm:$0xf]
        %473 = vrot.lane.b32.xlu0 %v469, 96
        %v474 = vpop.permute.xlu0 %473
        %475 = vrot.lane.b32.xlu0 %v470, 96
        %v476 = vpop.permute.xlu0 %475
        %v477 = vrot.slane %v474, 4
        %v478 = vrot.slane %v476, 4
        %v479 = vsel %vm217, %v477, %v478
        %vm480 = vcmask 785408
        %v481 = vsel %vm480, %v474, %v479
        %483 = vst [vmem:[#allocation2 + $0xa0] sm:$0xff] %v481
        %v484 = vld [vmem:[%s204] sm:$0xff]
        %v485 = vld [vmem:[%s204 + $0x8] sm:$0xf]
        %488 = vrot.lane.b32.xlu0 %v484, 96
        %v489 = vpop.permute.xlu0 %488
        %490 = vrot.lane.b32.xlu0 %v485, 96
        %v491 = vpop.permute.xlu0 %490
        %v492 = vrot.slane %v489, 4
        %v493 = vrot.slane %v491, 4
        %v494 = vsel %vm217, %v492, %v493
        %v495 = vsel %vm480, %v489, %v494
        %497 = vst [vmem:[#allocation2 + $0xa8] sm:$0xff] %v495
        %v498 = vld [vmem:[%s174] sm:$0xff]
        %v499 = vld [vmem:[%s174 + $0x8] sm:$0xf]
        %502 = vrot.lane.b32.xlu0 %v498, 95
        %v503 = vpop.permute.xlu0 %502
        %504 = vrot.lane.b32.xlu0 %v499, 95
        %v505 = vpop.permute.xlu0 %504
        %v506 = vrot.slane %v503, 4
        %v507 = vrot.slane %v505, 4
        %v508 = vsel %vm217, %v506, %v507
        %vm509 = vcmask 777216
        %v510 = vsel %vm509, %v503, %v508
        %512 = vst [vmem:[#allocation2 + $0xb0] sm:$0xff] %v510
        %v513 = vld [vmem:[%s204] sm:$0xff]
        %v514 = vld [vmem:[%s204 + $0x8] sm:$0xf]
        %517 = vrot.lane.b32.xlu0 %v513, 95
        %v518 = vpop.permute.xlu0 %517
        %519 = vrot.lane.b32.xlu0 %v514, 95
        %v520 = vpop.permute.xlu0 %519
        %v521 = vrot.slane %v518, 4
        %v522 = vrot.slane %v520, 4
        %v523 = vsel %vm217, %v521, %v522
        %v524 = vsel %vm509, %v518, %v523
        %526 = vst [vmem:[#allocation2 + $0xb8] sm:$0xff] %v524
        %v527 = vld [vmem:[%s174] sm:$0xff]
        %v528 = vld [vmem:[%s174 + $0x8] sm:$0xf]
        %531 = vrot.lane.b32.xlu0 %v527, 94
        %v532 = vpop.permute.xlu0 %531
        %533 = vrot.lane.b32.xlu0 %v528, 94
        %v534 = vpop.permute.xlu0 %533
        %v535 = vrot.slane %v532, 4
        %v536 = vrot.slane %v534, 4
        %v537 = vsel %vm217, %v535, %v536
        %vm538 = vcmask 769024
        %v539 = vsel %vm538, %v532, %v537
        %541 = vst [vmem:[#allocation2 + $0xc0] sm:$0xff] %v539
        %v542 = vld [vmem:[%s204] sm:$0xff]
        %v543 = vld [vmem:[%s204 + $0x8] sm:$0xf]
        %546 = vrot.lane.b32.xlu0 %v542, 94
        %v547 = vpop.permute.xlu0 %546
        %548 = vrot.lane.b32.xlu0 %v543, 94
        %v549 = vpop.permute.xlu0 %548
        %v550 = vrot.slane %v547, 4
        %v551 = vrot.slane %v549, 4
        %v552 = vsel %vm217, %v550, %v551
        %v553 = vsel %vm538, %v547, %v552
        %555 = vst [vmem:[#allocation2 + $0xc8] sm:$0xff] %v553
        %v556 = vld [vmem:[%s174] sm:$0xff]
        %v557 = vld [vmem:[%s174 + $0x8] sm:$0xf]
        %560 = vrot.lane.b32.xlu0 %v556, 93
        %v561 = vpop.permute.xlu0 %560
        %562 = vrot.lane.b32.xlu0 %v557, 93
        %v563 = vpop.permute.xlu0 %562
        %v564 = vrot.slane %v561, 4
        %v565 = vrot.slane %v563, 4
        %v566 = vsel %vm217, %v564, %v565
        %vm567 = vcmask 760832
        %v568 = vsel %vm567, %v561, %v566
        %570 = vst [vmem:[#allocation2 + $0xd0] sm:$0xff] %v568
        %v571 = vld [vmem:[%s204] sm:$0xff]
        %v572 = vld [vmem:[%s204 + $0x8] sm:$0xf]
        %575 = vrot.lane.b32.xlu0 %v571, 93
        %v576 = vpop.permute.xlu0 %575
        %577 = vrot.lane.b32.xlu0 %v572, 93
        %v578 = vpop.permute.xlu0 %577
        %v579 = vrot.slane %v576, 4
        %v580 = vrot.slane %v578, 4
        %v581 = vsel %vm217, %v579, %v580
        %v582 = vsel %vm567, %v576, %v581
        %584 = vst [vmem:[#allocation2 + $0xd8] sm:$0xff] %v582
        %v585 = vld [vmem:[%s174] sm:$0xff]
        %v586 = vld [vmem:[%s174 + $0x8] sm:$0xf]
        %589 = vrot.lane.b32.xlu0 %v585, 92
        %v590 = vpop.permute.xlu0 %589
        %591 = vrot.lane.b32.xlu0 %v586, 92
        %v592 = vpop.permute.xlu0 %591
        %v593 = vrot.slane %v590, 4
        %v594 = vrot.slane %v592, 4
        %v595 = vsel %vm217, %v593, %v594
        %vm596 = vcmask 752640
        %v597 = vsel %vm596, %v590, %v595
        %599 = vst [vmem:[#allocation2 + $0xe0] sm:$0xff] %v597
        %v600 = vld [vmem:[%s204] sm:$0xff]
        %v601 = vld [vmem:[%s204 + $0x8] sm:$0xf]
        %604 = vrot.lane.b32.xlu0 %v600, 92
        %v605 = vpop.permute.xlu0 %604
        %606 = vrot.lane.b32.xlu0 %v601, 92
        %v607 = vpop.permute.xlu0 %606
        %v608 = vrot.slane %v605, 4
        %v609 = vrot.slane %v607, 4
        %v610 = vsel %vm217, %v608, %v609
        %v611 = vsel %vm596, %v605, %v610
        %613 = vst [vmem:[#allocation2 + $0xe8] sm:$0xff] %v611
        %v614 = vld [vmem:[%s174] sm:$0xff]
        %v615 = vld [vmem:[%s174 + $0x8] sm:$0xf]
        %618 = vrot.lane.b32.xlu0 %v614, 80
        %v619 = vpop.permute.xlu0 %618
        %620 = vrot.lane.b32.xlu0 %v615, 80
        %v621 = vpop.permute.xlu0 %620
        %v622 = vrot.slane %v619, 4
        %v623 = vrot.slane %v621, 4
        %v624 = vsel %vm217, %v622, %v623
        %vm625 = vcmask 654336
        %v626 = vsel %vm625, %v619, %v624
        %628 = vst [vmem:[#allocation2 + $0xf0] sm:$0xff] %v626
        %v629 = vld [vmem:[%s204] sm:$0xff]
        %v630 = vld [vmem:[%s204 + $0x8] sm:$0xf]
        %633 = vrot.lane.b32.xlu0 %v629, 80
        %v634 = vpop.permute.xlu0 %633
        %635 = vrot.lane.b32.xlu0 %v630, 80
        %v636 = vpop.permute.xlu0 %635
        %v637 = vrot.slane %v634, 4
        %v638 = vrot.slane %v636, 4
        %v639 = vsel %vm217, %v637, %v638
        %v640 = vsel %vm625, %v634, %v639
        %642 = vst [vmem:[#allocation2 + $0xf8] sm:$0xff] %v640
        %v643 = vld [vmem:[%s174] sm:$0xff]
        %v644 = vld [vmem:[%s174 + $0x8] sm:$0xf]
        %647 = vrot.lane.b32.xlu0 %v643, 79
        %v648 = vpop.permute.xlu0 %647
        %649 = vrot.lane.b32.xlu0 %v644, 79
        %v650 = vpop.permute.xlu0 %649
        %v651 = vrot.slane %v648, 4
        %v652 = vrot.slane %v650, 4
        %v653 = vsel %vm217, %v651, %v652
        %vm654 = vcmask 646144
        %v655 = vsel %vm654, %v648, %v653
        %657 = vst [vmem:[#allocation2 + $0x100] sm:$0xff] %v655
        %v658 = vld [vmem:[%s204] sm:$0xff]
        %v659 = vld [vmem:[%s204 + $0x8] sm:$0xf]
        %662 = vrot.lane.b32.xlu0 %v658, 79
        %v663 = vpop.permute.xlu0 %662
        %664 = vrot.lane.b32.xlu0 %v659, 79
        %v665 = vpop.permute.xlu0 %664
        %v666 = vrot.slane %v663, 4
        %v667 = vrot.slane %v665, 4
        %v668 = vsel %vm217, %v666, %v667
        %v669 = vsel %vm654, %v663, %v668
        %671 = vst [vmem:[#allocation2 + $0x108] sm:$0xff] %v669
        %v672 = vld [vmem:[%s174] sm:$0xff]
        %v673 = vld [vmem:[%s174 + $0x8] sm:$0xf]
        %676 = vrot.lane.b32.xlu0 %v672, 78
        %v677 = vpop.permute.xlu0 %676
        %678 = vrot.lane.b32.xlu0 %v673, 78
        %v679 = vpop.permute.xlu0 %678
        %v680 = vrot.slane %v677, 4
        %v681 = vrot.slane %v679, 4
        %v682 = vsel %vm217, %v680, %v681
        %vm683 = vcmask 637952
        %v684 = vsel %vm683, %v677, %v682
        %686 = vst [vmem:[#allocation2 + $0x110] sm:$0xff] %v684
        %v687 = vld [vmem:[%s204] sm:$0xff]
        %v688 = vld [vmem:[%s204 + $0x8] sm:$0xf]
        %691 = vrot.lane.b32.xlu0 %v687, 78
        %v692 = vpop.permute.xlu0 %691
        %693 = vrot.lane.b32.xlu0 %v688, 78
        %v694 = vpop.permute.xlu0 %693
        %v695 = vrot.slane %v692, 4
        %v696 = vrot.slane %v694, 4
        %v697 = vsel %vm217, %v695, %v696
        %v698 = vsel %vm683, %v692, %v697
        %700 = vst [vmem:[#allocation2 + $0x118] sm:$0xff] %v698
        %v701 = vld [vmem:[%s174] sm:$0xff]
        %v702 = vld [vmem:[%s174 + $0x8] sm:$0xf]
        %705 = vrot.lane.b32.xlu0 %v701, 77
        %v706 = vpop.permute.xlu0 %705
        %707 = vrot.lane.b32.xlu0 %v702, 77
        %v708 = vpop.permute.xlu0 %707
        %v709 = vrot.slane %v706, 4
        %v710 = vrot.slane %v708, 4
        %v711 = vsel %vm217, %v709, %v710
        %vm712 = vcmask 629760
        %v713 = vsel %vm712, %v706, %v711
        %715 = vst [vmem:[#allocation2 + $0x120] sm:$0xff] %v713
        %v716 = vld [vmem:[%s204] sm:$0xff]
        %v717 = vld [vmem:[%s204 + $0x8] sm:$0xf]
        %720 = vrot.lane.b32.xlu0 %v716, 77
        %v721 = vpop.permute.xlu0 %720
        %722 = vrot.lane.b32.xlu0 %v717, 77
        %v723 = vpop.permute.xlu0 %722
        %v724 = vrot.slane %v721, 4
        %v725 = vrot.slane %v723, 4
        %v726 = vsel %vm217, %v724, %v725
        %v727 = vsel %vm712, %v721, %v726
        %729 = vst [vmem:[#allocation2 + $0x128] sm:$0xff] %v727
        %v730 = vld [vmem:[%s174] sm:$0xff]
        %v731 = vld [vmem:[%s174 + $0x8] sm:$0xf]
        %734 = vrot.lane.b32.xlu0 %v730, 76
        %v735 = vpop.permute.xlu0 %734
        %736 = vrot.lane.b32.xlu0 %v731, 76
        %v737 = vpop.permute.xlu0 %736
        %v738 = vrot.slane %v735, 4
        %v739 = vrot.slane %v737, 4
        %v740 = vsel %vm217, %v738, %v739
        %vm741 = vcmask 621568
        %v742 = vsel %vm741, %v735, %v740
        %744 = vst [vmem:[#allocation2 + $0x130] sm:$0xff] %v742
        %v745 = vld [vmem:[%s204] sm:$0xff]
        %v746 = vld [vmem:[%s204 + $0x8] sm:$0xf]
        %749 = vrot.lane.b32.xlu0 %v745, 76
        %v750 = vpop.permute.xlu0 %749
        %751 = vrot.lane.b32.xlu0 %v746, 76
        %v752 = vpop.permute.xlu0 %751
        %v753 = vrot.slane %v750, 4
        %v754 = vrot.slane %v752, 4
        %v755 = vsel %vm217, %v753, %v754
        %v756 = vsel %vm741, %v750, %v755
        %758 = vst [vmem:[#allocation2 + $0x138] sm:$0xff] %v756
        %v759 = vld [vmem:[%s174] sm:$0xff]
        %v760 = vld [vmem:[%s174 + $0x8] sm:$0xf]
        %763 = vrot.lane.b32.xlu0 %v759, 64
        %v764 = vpop.permute.xlu0 %763
        %765 = vrot.lane.b32.xlu0 %v760, 64
        %v766 = vpop.permute.xlu0 %765
        %v767 = vrot.slane %v764, 4
        %v768 = vrot.slane %v766, 4
        %v769 = vsel %vm217, %v767, %v768
        %vm770 = vcmask 523264
        %v771 = vsel %vm770, %v764, %v769
        %773 = vst [vmem:[#allocation2 + $0x140] sm:$0xff] %v771
        %v774 = vld [vmem:[%s204] sm:$0xff]
        %v775 = vld [vmem:[%s204 + $0x8] sm:$0xf]
        %778 = vrot.lane.b32.xlu0 %v774, 64
        %v779 = vpop.permute.xlu0 %778
        %780 = vrot.lane.b32.xlu0 %v775, 64
        %v781 = vpop.permute.xlu0 %780
        %v782 = vrot.slane %v779, 4
        %v783 = vrot.slane %v781, 4
        %v784 = vsel %vm217, %v782, %v783
        %v785 = vsel %vm770, %v779, %v784
        %787 = vst [vmem:[#allocation2 + $0x148] sm:$0xff] %v785
        %v788 = vld [vmem:[%s174] sm:$0xff]
        %v789 = vld [vmem:[%s174 + $0x8] sm:$0xf]
        %792 = vrot.lane.b32.xlu0 %v788, 63
        %v793 = vpop.permute.xlu0 %792
        %794 = vrot.lane.b32.xlu0 %v789, 63
        %v795 = vpop.permute.xlu0 %794
        %v796 = vrot.slane %v793, 4
        %v797 = vrot.slane %v795, 4
        %v798 = vsel %vm217, %v796, %v797
        %vm799 = vcmask 515072
        %v800 = vsel %vm799, %v793, %v798
        %802 = vst [vmem:[#allocation2 + $0x150] sm:$0xff] %v800
        %v803 = vld [vmem:[%s204] sm:$0xff]
        %v804 = vld [vmem:[%s204 + $0x8] sm:$0xf]
        %807 = vrot.lane.b32.xlu0 %v803, 63
        %v808 = vpop.permute.xlu0 %807
        %809 = vrot.lane.b32.xlu0 %v804, 63
        %v810 = vpop.permute.xlu0 %809
        %v811 = vrot.slane %v808, 4
        %v812 = vrot.slane %v810, 4
        %v813 = vsel %vm217, %v811, %v812
        %v814 = vsel %vm799, %v808, %v813
        %816 = vst [vmem:[#allocation2 + $0x158] sm:$0xff] %v814
        %v817 = vld [vmem:[%s174] sm:$0xff]
        %v818 = vld [vmem:[%s174 + $0x8] sm:$0xf]
        %821 = vrot.lane.b32.xlu0 %v817, 62
        %v822 = vpop.permute.xlu0 %821
        %823 = vrot.lane.b32.xlu0 %v818, 62
        %v824 = vpop.permute.xlu0 %823
        %v825 = vrot.slane %v822, 4
        %v826 = vrot.slane %v824, 4
        %v827 = vsel %vm217, %v825, %v826
        %vm828 = vcmask 506880
        %v829 = vsel %vm828, %v822, %v827
        %831 = vst [vmem:[#allocation2 + $0x160] sm:$0xff] %v829
        %v832 = vld [vmem:[%s204] sm:$0xff]
        %v833 = vld [vmem:[%s204 + $0x8] sm:$0xf]
        %836 = vrot.lane.b32.xlu0 %v832, 62
        %v837 = vpop.permute.xlu0 %836
        %838 = vrot.lane.b32.xlu0 %v833, 62
        %v839 = vpop.permute.xlu0 %838
        %v840 = vrot.slane %v837, 4
        %v841 = vrot.slane %v839, 4
        %v842 = vsel %vm217, %v840, %v841
        %v843 = vsel %vm828, %v837, %v842
        %845 = vst [vmem:[#allocation2 + $0x168] sm:$0xff] %v843
        %v846 = vld [vmem:[%s174] sm:$0xff]
        %v847 = vld [vmem:[%s174 + $0x8] sm:$0xf]
        %850 = vrot.lane.b32.xlu0 %v846, 61
        %v851 = vpop.permute.xlu0 %850
        %852 = vrot.lane.b32.xlu0 %v847, 61
        %v853 = vpop.permute.xlu0 %852
        %v854 = vrot.slane %v851, 4
        %v855 = vrot.slane %v853, 4
        %v856 = vsel %vm217, %v854, %v855
        %vm857 = vcmask 498688
        %v858 = vsel %vm857, %v851, %v856
        %860 = vst [vmem:[#allocation2 + $0x170] sm:$0xff] %v858
        %v861 = vld [vmem:[%s204] sm:$0xff]
        %v862 = vld [vmem:[%s204 + $0x8] sm:$0xf]
        %865 = vrot.lane.b32.xlu0 %v861, 61
        %v866 = vpop.permute.xlu0 %865
        %867 = vrot.lane.b32.xlu0 %v862, 61
        %v868 = vpop.permute.xlu0 %867
        %v869 = vrot.slane %v866, 4
        %v870 = vrot.slane %v868, 4
        %v871 = vsel %vm217, %v869, %v870
        %v872 = vsel %vm857, %v866, %v871
        %874 = vst [vmem:[#allocation2 + $0x178] sm:$0xff] %v872
        %v875 = vld [vmem:[%s174] sm:$0xff]
        %v876 = vld [vmem:[%s174 + $0x8] sm:$0xf]
        %879 = vrot.lane.b32.xlu0 %v875, 60
        %v880 = vpop.permute.xlu0 %879
        %881 = vrot.lane.b32.xlu0 %v876, 60
        %v882 = vpop.permute.xlu0 %881
        %v883 = vrot.slane %v880, 4
        %v884 = vrot.slane %v882, 4
        %v885 = vsel %vm217, %v883, %v884
        %vm886 = vcmask 490496
        %v887 = vsel %vm886, %v880, %v885
        %889 = vst [vmem:[#allocation2 + $0x180] sm:$0xff] %v887
        %v890 = vld [vmem:[%s204] sm:$0xff]
        %v891 = vld [vmem:[%s204 + $0x8] sm:$0xf]
        %894 = vrot.lane.b32.xlu0 %v890, 60
        %v895 = vpop.permute.xlu0 %894
        %896 = vrot.lane.b32.xlu0 %v891, 60
        %v897 = vpop.permute.xlu0 %896
        %v898 = vrot.slane %v895, 4
        %v899 = vrot.slane %v897, 4
        %v900 = vsel %vm217, %v898, %v899
        %v901 = vsel %vm886, %v895, %v900
        %903 = vst [vmem:[#allocation2 + $0x188] sm:$0xff] %v901
        %v904 = vld [vmem:[%s165] sm:$0xf]
        %v905 = vld [vmem:[#allocation2] sm:$0xff]
        %v906 = vld [vmem:[#allocation2 + $0x8] sm:$0xff]
        %v907 = vld [vmem:[#allocation2 + $0x10] sm:$0xff]
        %v908 = vld [vmem:[#allocation2 + $0x18] sm:$0xff]
        %v909 = vld [vmem:[#allocation2 + $0x20] sm:$0xff]
        %v910 = vld [vmem:[#allocation2 + $0x28] sm:$0xff]
        %v911 = vld [vmem:[#allocation2 + $0x30] sm:$0xff]
        %v912 = vld [vmem:[#allocation2 + $0x38] sm:$0xff]
        %v913 = vld [vmem:[#allocation2 + $0x40] sm:$0xff]
        %v914 = vld [vmem:[#allocation2 + $0x48] sm:$0xff]
        %v915 = vld [vmem:[#allocation2 + $0x50] sm:$0xff]
        %v916 = vld [vmem:[#allocation2 + $0x58] sm:$0xff]
        %v917 = vld [vmem:[#allocation2 + $0x60] sm:$0xff]
        %v918 = vld [vmem:[#allocation2 + $0x68] sm:$0xff]
        %v919 = vld [vmem:[#allocation2 + $0x70] sm:$0xff]
        %v920 = vld [vmem:[#allocation2 + $0x78] sm:$0xff]
        %v921 = vld [vmem:[#allocation2 + $0x80] sm:$0xff]
        %v922 = vld [vmem:[#allocation2 + $0x88] sm:$0xff]
        %v923 = vld [vmem:[#allocation2 + $0x90] sm:$0xff]
        %v924 = vld [vmem:[#allocation2 + $0x98] sm:$0xff]
        %v925 = vld [vmem:[#allocation2 + $0xa0] sm:$0xff]
        %v926 = vld [vmem:[#allocation2 + $0xa8] sm:$0xff]
        %v927 = vld [vmem:[#allocation2 + $0xb0] sm:$0xff]
        %v928 = vld [vmem:[#allocation2 + $0xb8] sm:$0xff]
        %v929 = vld [vmem:[#allocation2 + $0xc0] sm:$0xff]
        %v930 = vld [vmem:[#allocation2 + $0xc8] sm:$0xff]
        %v931 = vld [vmem:[#allocation2 + $0xd0] sm:$0xff]
        %v932 = vld [vmem:[#allocation2 + $0xd8] sm:$0xff]
        %v933 = vld [vmem:[#allocation2 + $0xe0] sm:$0xff]
        %v934 = vld [vmem:[#allocation2 + $0xe8] sm:$0xff]
        %v935 = vld [vmem:[#allocation2 + $0xf0] sm:$0xff]
        %v936 = vld [vmem:[#allocation2 + $0xf8] sm:$0xff]
        %v937 = vld [vmem:[#allocation2 + $0x100] sm:$0xff]
        %v938 = vld [vmem:[#allocation2 + $0x108] sm:$0xff]
        %v939 = vld [vmem:[#allocation2 + $0x110] sm:$0xff]
        %v940 = vld [vmem:[#allocation2 + $0x118] sm:$0xff]
        %v941 = vld [vmem:[#allocation2 + $0x120] sm:$0xff]
        %v942 = vld [vmem:[#allocation2 + $0x128] sm:$0xff]
        %v943 = vld [vmem:[#allocation2 + $0x130] sm:$0xff]
        %v944 = vld [vmem:[#allocation2 + $0x138] sm:$0xff]
        %v945 = vld [vmem:[#allocation2 + $0x140] sm:$0xff]
        %v946 = vld [vmem:[#allocation2 + $0x148] sm:$0xff]
        %v947 = vld [vmem:[#allocation2 + $0x150] sm:$0xff]
        %v948 = vld [vmem:[#allocation2 + $0x158] sm:$0xff]
        %v949 = vld [vmem:[#allocation2 + $0x160] sm:$0xff]
        %v950 = vld [vmem:[#allocation2 + $0x168] sm:$0xff]
        %v951 = vld [vmem:[#allocation2 + $0x170] sm:$0xff]
        %v952 = vld [vmem:[#allocation2 + $0x178] sm:$0xff]
        %v953 = vld [vmem:[#allocation2 + $0x180] sm:$0xff]
        %v954 = vld [vmem:[#allocation2 + $0x188] sm:$0xff]
        %v957 = vunpack.c.l.s4 1983009808
        %v958 = vunpack.c.0.s8 %v957
        %v959 = vlaneseq
        %v960 = vshrl.u32 %v959, 7
        %v961 = vsub.s32 %v958, %v960
        %v962 = vrot.slane %v904, %v961
        %v963 = vcombine.high %v962, %v962
        %v1015 = vunpack.c.l.b16 %v905
        %v1016 = vunpack.c.h.b16 %v905
        %v1017 = vunpack.c.l.b16 %v906
        %v1018 = vunpack.c.h.b16 %v906
        %v1019 = vunpack.c.l.b16 %v907
        %v1020 = vunpack.c.h.b16 %v907
        %v1021 = vunpack.c.l.b16 %v908
        %v1022 = vunpack.c.h.b16 %v908
        %v1023 = vunpack.c.l.b16 %v909
        %v1024 = vunpack.c.h.b16 %v909
        %v1025 = vunpack.c.l.b16 %v910
        %v1026 = vunpack.c.h.b16 %v910
        %v1027 = vunpack.c.l.b16 %v911
        %v1028 = vunpack.c.h.b16 %v911
        %v1029 = vunpack.c.l.b16 %v912
        %v1030 = vunpack.c.h.b16 %v912
        %v1031 = vunpack.c.l.b16 %v913
        %v1032 = vunpack.c.h.b16 %v913
        %v1033 = vunpack.c.l.b16 %v914
        %v1034 = vunpack.c.h.b16 %v914
        %v1035 = vunpack.c.l.b16 %v915
        %v1036 = vunpack.c.h.b16 %v915
        %v1037 = vunpack.c.l.b16 %v916
        %v1038 = vunpack.c.h.b16 %v916
        %v1039 = vunpack.c.l.b16 %v917
        %v1040 = vunpack.c.h.b16 %v917
        %v1041 = vunpack.c.l.b16 %v918
        %v1042 = vunpack.c.h.b16 %v918
        %v1043 = vunpack.c.l.b16 %v919
        %v1044 = vunpack.c.h.b16 %v919
        %v1045 = vunpack.c.l.b16 %v920
        %v1046 = vunpack.c.h.b16 %v920
        %v1047 = vunpack.c.l.b16 %v921
        %v1048 = vunpack.c.h.b16 %v921
        %v1049 = vunpack.c.l.b16 %v922
        %v1050 = vunpack.c.h.b16 %v922
        %v1051 = vunpack.c.l.b16 %v923
        %v1052 = vunpack.c.h.b16 %v923
        %v1053 = vunpack.c.l.b16 %v924
        %v1054 = vunpack.c.h.b16 %v924
        %v1055 = vunpack.c.l.b16 %v925
        %v1056 = vunpack.c.h.b16 %v925
        %v1057 = vunpack.c.l.b16 %v926
        %v1058 = vunpack.c.h.b16 %v926
        %v1059 = vunpack.c.l.b16 %v927
        %v1060 = vunpack.c.h.b16 %v927
        %v1061 = vunpack.c.l.b16 %v928
        %v1062 = vunpack.c.h.b16 %v928
        %v1063 = vunpack.c.l.b16 %v929
        %v1064 = vunpack.c.h.b16 %v929
        %v1065 = vunpack.c.l.b16 %v930
        %v1066 = vunpack.c.h.b16 %v930
        %v1067 = vunpack.c.l.b16 %v931
        %v1068 = vunpack.c.h.b16 %v931
        %v1069 = vunpack.c.l.b16 %v932
        %v1070 = vunpack.c.h.b16 %v932
        %v1071 = vunpack.c.l.b16 %v933
        %v1072 = vunpack.c.h.b16 %v933
        %v1073 = vunpack.c.l.b16 %v934
        %v1074 = vunpack.c.h.b16 %v934
        %v1075 = vunpack.c.l.b16 %v935
        %v1076 = vunpack.c.h.b16 %v935
        %v1077 = vunpack.c.l.b16 %v936
        %v1078 = vunpack.c.h.b16 %v936
        %v1079 = vunpack.c.l.b16 %v937
        %v1080 = vunpack.c.h.b16 %v937
        %v1081 = vunpack.c.l.b16 %v938
        %v1082 = vunpack.c.h.b16 %v938
        %v1083 = vunpack.c.l.b16 %v939
        %v1084 = vunpack.c.h.b16 %v939
        %v1085 = vunpack.c.l.b16 %v940
        %v1086 = vunpack.c.h.b16 %v940
        %v1087 = vunpack.c.l.b16 %v941
        %v1088 = vunpack.c.h.b16 %v941
        %v1089 = vunpack.c.l.b16 %v942
        %v1090 = vunpack.c.h.b16 %v942
        %v1091 = vunpack.c.l.b16 %v943
        %v1092 = vunpack.c.h.b16 %v943
        %v1093 = vunpack.c.l.b16 %v944
        %v1094 = vunpack.c.h.b16 %v944
        %v1095 = vunpack.c.l.b16 %v945
        %v1096 = vunpack.c.h.b16 %v945
        %v1097 = vunpack.c.l.b16 %v946
        %v1098 = vunpack.c.h.b16 %v946
        %v1099 = vunpack.c.l.b16 %v947
        %v1100 = vunpack.c.h.b16 %v947
        %v1101 = vunpack.c.l.b16 %v948
        %v1102 = vunpack.c.h.b16 %v948
        %v1103 = vunpack.c.l.b16 %v949
        %v1104 = vunpack.c.h.b16 %v949
        %v1105 = vunpack.c.l.b16 %v950
        %v1106 = vunpack.c.h.b16 %v950
        %v1107 = vunpack.c.l.b16 %v951
        %v1108 = vunpack.c.h.b16 %v951
        %v1109 = vunpack.c.l.b16 %v952
        %v1110 = vunpack.c.h.b16 %v952
        %v1111 = vunpack.c.l.b16 %v953
        %v1112 = vunpack.c.h.b16 %v953
        %v1113 = vunpack.c.l.b16 %v954
        %v1114 = vunpack.c.h.b16 %v954
        %v1115 = vpack.c.b16 %v1019, %v1015
        %v1116 = vpack.c.b16 %v1020, %v1016
        %v1117 = vpack.c.b16 %v1021, %v1017
        %v1118 = vpack.c.b16 %v1022, %v1018
        %v1119 = vpack.c.b16 %v1027, %v1023
        %v1120 = vpack.c.b16 %v1028, %v1024
        %v1121 = vpack.c.b16 %v1029, %v1025
        %v1122 = vpack.c.b16 %v1030, %v1026
        %v1123 = vpack.c.b16 %v1035, %v1031
        %v1124 = vpack.c.b16 %v1036, %v1032
        %v1125 = vpack.c.b16 %v1037, %v1033
        %v1126 = vpack.c.b16 %v1038, %v1034
        %v1127 = vpack.c.b16 %v1043, %v1039
        %v1128 = vpack.c.b16 %v1044, %v1040
        %v1129 = vpack.c.b16 %v1045, %v1041
        %v1130 = vpack.c.b16 %v1046, %v1042
        %v1131 = vpack.c.b16 %v1051, %v1047
        %v1132 = vpack.c.b16 %v1052, %v1048
        %v1133 = vpack.c.b16 %v1053, %v1049
        %v1134 = vpack.c.b16 %v1054, %v1050
        %v1135 = vpack.c.b16 %v1059, %v1055
        %v1136 = vpack.c.b16 %v1060, %v1056
        %v1137 = vpack.c.b16 %v1061, %v1057
        %v1138 = vpack.c.b16 %v1062, %v1058
        %v1139 = vpack.c.b16 %v1067, %v1063
        %v1140 = vpack.c.b16 %v1068, %v1064
        %v1141 = vpack.c.b16 %v1069, %v1065
        %v1142 = vpack.c.b16 %v1070, %v1066
        %v1143 = vpack.c.b16 %v1075, %v1071
        %v1144 = vpack.c.b16 %v1076, %v1072
        %v1145 = vpack.c.b16 %v1077, %v1073
        %v1146 = vpack.c.b16 %v1078, %v1074
        %v1147 = vpack.c.b16 %v1083, %v1079
        %v1148 = vpack.c.b16 %v1084, %v1080
        %v1149 = vpack.c.b16 %v1085, %v1081
        %v1150 = vpack.c.b16 %v1086, %v1082
        %v1151 = vpack.c.b16 %v1091, %v1087
        %v1152 = vpack.c.b16 %v1092, %v1088
        %v1153 = vpack.c.b16 %v1093, %v1089
        %v1154 = vpack.c.b16 %v1094, %v1090
        %v1155 = vpack.c.b16 %v1099, %v1095
        %v1156 = vpack.c.b16 %v1100, %v1096
        %v1157 = vpack.c.b16 %v1101, %v1097
        %v1158 = vpack.c.b16 %v1102, %v1098
        %v1159 = vpack.c.b16 %v1107, %v1103
        %v1160 = vpack.c.b16 %v1108, %v1104
        %v1161 = vpack.c.b16 %v1109, %v1105
        %v1162 = vpack.c.b16 %v1110, %v1106
        %v1163 = vpack.c.b16 %v1111, %v1111
        %v1164 = vpack.c.b16 %v1112, %v1112
        %v1165 = vpack.c.b16 %v1113, %v1113
        %v1166 = vpack.c.b16 %v1114, %v1114
        %vm1215 = vcmask 588800
        %v1217 = vsel %vm1215, %v963, 0
        %vm1219 = vcmask 1043456
        %v1221 = vsel %vm1219, %v1163, 0
        %v1224 = vsel %vm1219, %v1164, 0
        %v1227 = vsel %vm1219, %v1165, 0
        %v1230 = vsel %vm1219, %v1166, 0
        %1232 = vmatprep.subr.bf16.mxu0 %v1144
        %1233 = vmatpush1.bf16.msra.mxu0 %v1143
        %1234 = vmatprep.subr.bf16.mxu0 %v1140
        %1235 = vmatpush1.bf16.msra.mxu0 %v1139
        %1236 = vmatprep.subr.bf16.mxu0 %v1136
        %1237 = vmatpush1.bf16.msra.mxu0 %v1135
        %1238 = vmatprep.subr.bf16.mxu0 %v1132
        %1239 = vmatpush1.bf16.msra.mxu0 %v1131
        %1240 = vmatprep.subr.bf16.mxu0 %v1128
        %1241 = vmatpush1.bf16.msra.mxu0 %v1127
        %1242 = vmatprep.subr.bf16.mxu0 %v1124
        %1243 = vmatpush1.bf16.msra.mxu0 %v1123
        %1244 = vmatprep.subr.bf16.mxu0 %v1120
        %1245 = vmatpush1.bf16.msra.mxu0 %v1119
        %1246 = vmatprep.subr.bf16.mxu0 %v1116
        %1247 = vmatpush1.bf16.msra.mxu0 %v1115
        %1248 = vmatprep.subr.bf16.mxu0 0
        %1249 = vmatpush2.bf16.msra.mxu0 0
        %1250 = vmatprep.subr.bf16.mxu0 0
        %1251 = vmatpush2.bf16.msra.mxu0 0
        %1252 = vmatprep.subr.bf16.mxu0 0
        %1253 = vmatpush2.bf16.msra.mxu0 0
        %1254 = vmatprep.subr.bf16.mxu0 %v1224
        %1255 = vmatpush2.bf16.msra.mxu0 %v1221
        %1256 = vmatprep.subr.bf16.mxu0 %v1160
        %1257 = vmatpush2.bf16.msra.mxu0 %v1159
        %1258 = vmatprep.subr.bf16.mxu0 %v1156
        %1259 = vmatpush2.bf16.msra.mxu0 %v1155
        %1260 = vmatprep.subr.bf16.mxu0 %v1152
        %1261 = vmatpush2.bf16.msra.mxu0 %v1151
        %1262 = vmatprep.subr.bf16.mxu0 %v1148
        %1263 = vmatpush2.bf16.msra.mxu0 %v1147
        %1264 = vmatprep.mubr.bf16.mxu0 %v1217
        %1265 = vmatmul.mubr.bf16.gmra.mxu0 %v962
        %v1266 = vpop.f32.mrf.mxu0
        %v1267 = vadd.f32 0.0, %v1266
        %v1268 = vpop.f32.mrf.mxu0
        %v1269 = vadd.f32 0.0, %v1268
        %v1270 = vpop.f32.mrf.mxu0
        %v1271 = vpop.f32.mrf.mxu0
        %1272 = vdwg.mxu0
        %1273 = vmatprep.subr.bf16.mxu0 %v1146
        %1274 = vmatpush1.bf16.msra.mxu0 %v1145
        %1275 = vmatprep.subr.bf16.mxu0 %v1142
        %1276 = vmatpush1.bf16.msra.mxu0 %v1141
        %1277 = vmatprep.subr.bf16.mxu0 %v1138
        %1278 = vmatpush1.bf16.msra.mxu0 %v1137
        %1279 = vmatprep.subr.bf16.mxu0 %v1134
        %1280 = vmatpush1.bf16.msra.mxu0 %v1133
        %1281 = vmatprep.subr.bf16.mxu0 %v1130
        %1282 = vmatpush1.bf16.msra.mxu0 %v1129
        %1283 = vmatprep.subr.bf16.mxu0 %v1126
        %1284 = vmatpush1.bf16.msra.mxu0 %v1125
        %1285 = vmatprep.subr.bf16.mxu0 %v1122
        %1286 = vmatpush1.bf16.msra.mxu0 %v1121
        %1287 = vmatprep.subr.bf16.mxu0 %v1118
        %1288 = vmatpush1.bf16.msra.mxu0 %v1117
        %1289 = vmatprep.subr.bf16.mxu0 0
        %1290 = vmatpush2.bf16.msra.mxu0 0
        %1291 = vmatprep.subr.bf16.mxu0 0
        %1292 = vmatpush2.bf16.msra.mxu0 0
        %1293 = vmatprep.subr.bf16.mxu0 0
        %1294 = vmatpush2.bf16.msra.mxu0 0
        %1295 = vmatprep.subr.bf16.mxu0 %v1230
        %1296 = vmatpush2.bf16.msra.mxu0 %v1227
        %1297 = vmatprep.subr.bf16.mxu0 %v1162
        %1298 = vmatpush2.bf16.msra.mxu0 %v1161
        %1299 = vmatprep.subr.bf16.mxu0 %v1158
        %1300 = vmatpush2.bf16.msra.mxu0 %v1157
        %1301 = vmatprep.subr.bf16.mxu0 %v1154
        %1302 = vmatpush2.bf16.msra.mxu0 %v1153
        %1303 = vmatprep.subr.bf16.mxu0 %v1150
        %1304 = vmatpush2.bf16.msra.mxu0 %v1149
        %1305 = vmatprep.mubr.bf16.mxu0 %v1217
        %1306 = vmatmul.mubr.bf16.gmra.mxu0 %v962
        %v1307 = vpop.f32.mrf.mxu0
        %v1308 = vadd.f32 0.0, %v1307
        %v1309 = vpop.f32.mrf.mxu0
        %v1310 = vadd.f32 0.0, %v1309
        %v1311 = vpop.f32.mrf.mxu0
        %v1312 = vpop.f32.mrf.mxu0
        %1313 = vdwg.mxu0
        %v1316 = vcombine.low %v1267, %v1269
        %1318 = vst [vmem:[%s199] sm:$0xff] %v1316
        %v1321 = vcombine.low %v1308, %v1310
        %s1323 = scalar_lea.vmem %s199, 8 [#allocation8]
        %1324 = vst [vmem:[%s1323] sm:$0xff] %v1321
        %s1325 = sand.u32 %s82, 1
        %s1326 = scalar_lea.sflag [#allocation5], %s1325
        %s1327 = sand.u32 %s82, 1
        %s1328 = smul.addr %s1327, 16
        %s1329 = scalar_lea.vmem [#allocation8], %s1328
        // Predicated region
        $region37: #{tpu_custom_call.1} parent=27 // pred_check
          %p1330 = pneg %p92
        $region38: #{tpu_custom_call.1} parent=27 // pred_check_branch
          %1332 = sbr.rel (%p1330) target = $region40
        $region39: #{tpu_custom_call.1} parent=27 // pred_region
          %s1333 = smul.u32 2, %s22
          %s1335 = ssub.s32 256, 256
          %1336 = vsyncadd %s1326, %s1335
          %s1337 = smul.addr %s1333, 64
          %s1338 = scalar_lea.hbm %s2, %s1337
          %s1339 = sshll.u32 %s1329, 4
          %s1340 = int_to_ptr.vmem [resolvable:$true] %s1339
          %1345 = dma.vmem_to_hbm [thread:$0]  %s1340, 256, %s1338, %s1326, 128, 1152, 8
        $region40: #{tpu_custom_call.1} parent=27 // pred_fallthru
          _
      $region28: #{tpu_custom_call.1} parent=5 // pred_fallthru
        _
      %p1346 = scmp.le.s32.totalorder 2, %s17
      // Predicated region
      $region41: #{tpu_custom_call.1} parent=5 // pred_check
        %p1347 = pneg %p1346
      $region42: #{tpu_custom_call.1} parent=5 // pred_check_branch
        %1349 = sbr.rel (%p1347) target = $region44
      $region43: #{tpu_custom_call.1} parent=5 // pred_region
        %s1350 = ssub.s32 %s17, 2
        // Predicated region
        $region45: #{tpu_custom_call.1} parent=43 // pred_check
          %p1351 = pneg %p98
        $region46: #{tpu_custom_call.1} parent=43 // pred_check_branch
          %1353 = sbr.rel (%p1351) target = $region48
        $region47: #{tpu_custom_call.1} parent=43 // pred_region
          %s1354 = sand.u32 %s83, 1
          %s1355 = scalar_lea.sflag [#allocation5], %s1354
          %s1356 = sand.u32 %s83, 1
          %s1357 = smul.addr %s1356, 16
          %s1358 = scalar_lea.vmem [#allocation8], %s1357
          %1359 = dma.done %s1355, 256
        $region48: #{tpu_custom_call.1} parent=43 // pred_fallthru
          _
      $region44: #{tpu_custom_call.1} parent=5 // pred_fallthru
        _
    $region6: #{tpu_custom_call.1} parent=1 // loop_footer
      %s21 = sadd.s32 1, %s17
    $region7: #{tpu_custom_call.1} parent=1 // loop_footer_branch
      %16 = sbr.rel target = $region3
    $region8: #{tpu_custom_call.1} parent=1 // loop_exit
      _
    %1360 = vsyncpa [#allocation4], 1
    %s1361 = scalar_lea.sflag [#allocation4], 1
    %1362 = vsyncpa %s1361, 1
    %1363 = vsyncpa [#allocation7], 1
    %s1364 = scalar_lea.sflag [#allocation7], 1
    %1365 = vsyncpa %s1364, 1
    %1366 = vsyncpa [#allocation5], 1
    %s1367 = scalar_lea.sflag [#allocation5], 1
    %1368 = vsyncpa %s1367, 1

</llo_original>
